<compile_context>
chip_gen: v6e
topology: v6e:2x2x1
jax: 0.10.0
libtpu: 0.0.40
codegen_flags: <defaults>
</compile_context>

<pallas_src>
import numpy as np
import jax
import jax.numpy as jnp
from jax import lax
from jax.experimental import pallas as pl
from jax.experimental.pallas import tpu as pltpu


# -----------------------------------------------------------------------------
# Pallas kernel: entire forward pass (fused BiLSTM recurrence + conv + pool + MLP)
# -----------------------------------------------------------------------------
def conv_rnn_kernel(x_ref,                 # (T*Bp, 2E)  [x_t | x_{T-1-t}] per row
                    wih_ref,               # (2E, 8H)    block-diag, gate-interleaved
                    whh_ref,               # (2H, 8H)    block-diag, gate-interleaved
                    bg_ref,                # (1, 8H)     gate-interleaved bias sum
                    wcf_ref, wcb_ref, bc_ref,   # conv: (H,F) (H,F) (1,F)
                    w1h_ref, w1p_ref, b1_ref,   # fc1 split: (2H,FC) (F,FC) (1,FC)
                    w2_ref, b2_ref,             # fc2: (FC,L) (1,L)
                    out_ref,                    # (Bp, L)
                    gx_ref, seqf_ref, seqb_ref):  # VMEM scratch
    TB = x_ref.shape[0]
    Bp = out_ref.shape[0]
    T = TB // Bp
    H = wcf_ref.shape[0]

    # Input projection for ALL timesteps and BOTH directions: one MXU matmul.
    # gx[t*Bp:(t+1)*Bp] columns are [i_f,i_b,f_f,f_b,g_f,g_b,o_f,o_b] pre-activations
    # of the fwd step at time t and the bwd step at time T-1-t.
    gx_ref[...] = (jnp.dot(x_ref[...], wih_ref[...],
                           preferred_element_type=jnp.float32) + bg_ref[...])

    whh = whh_ref[...]                                   # hoisted (2H, 8H)
    h = jnp.zeros((Bp, 2 * H), jnp.float32)              # [h_f | h_b]
    c = jnp.zeros((Bp, 2 * H), jnp.float32)              # [c_f | c_b]

    # Fused fwd+bwd recurrence, fully unrolled (static T, static slice indices).
    # One MXU matmul per step; full-width sigmoid/tanh (2 EUP pushes per step).
    for t in range(T):
        pre = gx_ref[t * Bp:(t + 1) * Bp, :] + jnp.dot(
            h, whh, preferred_element_type=jnp.float32)   # (Bp, 8H)
        sg = jax.nn.sigmoid(pre)
        th = jnp.tanh(pre)
        i = sg[:, 0:2 * H]          # [i_f | i_b]
        f = sg[:, 2 * H:4 * H]      # [f_f | f_b]
        g = th[:, 4 * H:6 * H]      # [g_f | g_b]
        o = sg[:, 6 * H:8 * H]      # [o_f | o_b]
        c = f * c + i * g
        h = o * jnp.tanh(c)                               # [h_f(t) | h_b(T-1-t)]
        # rnn_seq writeback at ORIGINAL time indices (bwd half goes to T-1-t).
        seqf_ref[t * Bp:(t + 1) * Bp, :] = h[:, 0:H]
        seqb_ref[(T - 1 - t) * Bp:(T - t) * Bp, :] = h[:, H:2 * H]

    # Conv2d(1, F, (1, 2H)) on rnn_seq == per-timestep linear over 2H, then ReLU
    # and max_pool1d over the full sequence (running max over T, static unroll).
    conv = jnp.maximum(
        jnp.dot(seqf_ref[...], wcf_ref[...], preferred_element_type=jnp.float32)
        + jnp.dot(seqb_ref[...], wcb_ref[...], preferred_element_type=jnp.float32)
        + bc_ref[...], 0.0)                               # (T*Bp, F)
    pooled = conv[0:Bp, :]
    for t in range(1, T):
        pooled = jnp.maximum(pooled, conv[t * Bp:(t + 1) * Bp, :])

    # Head: cat([h_fwd, h_bwd, pooled]) @ w1 done as split matmuls (no lane concat),
    # then ReLU and fc2.  After the fused loop, h already holds [h_fwd_final | h_bwd_final].
    hid = jnp.maximum(
        jnp.dot(h, w1h_ref[...], preferred_element_type=jnp.float32)
        + jnp.dot(pooled, w1p_ref[...], preferred_element_type=jnp.float32)
        + b1_ref[...], 0.0)
    out_ref[...] = (jnp.dot(hid, w2_ref[...], preferred_element_type=jnp.float32)
                    + b2_ref[...])


# -----------------------------------------------------------------------------
# Wrapper: embedding lookup + layout plumbing (batch pad, time-major, fwd|bwd-rev
# concat) done host/XLA-side, then one gridless pallas_call.
# -----------------------------------------------------------------------------
def conv_rnn_forward_pallas(tokens, kp):
    x = kp["embedding"][tokens].astype(jnp.float32)          # (B, T, E)  glue gather
    B, T, E = x.shape
    H = kp["wcf"].shape[0]
    L = kp["w2"].shape[1]

    # Pad batch to a full 8-row sublane tile so every vreg/MXU row is used.
    Bp = ((B + 7) // 8) * 8
    x = jnp.pad(x, ((0, Bp - B), (0, 0), (0, 0)))
    x_tm = jnp.transpose(x, (1, 0, 2))                        # (T, Bp, E) time-major
    # Row t*Bp+b = [x(t, b) | x(T-1-t, b)]: fwd input and time-reversed bwd input.
    x_comb = jnp.concatenate([x_tm, x_tm[::-1]], axis=-1).reshape(T * Bp, 2 * E)

    args = (x_comb, kp["wih_blk"], kp["whh_blk"], kp["bg"],
            kp["wcf"], kp["wcb"], kp["bc"],
            kp["w1h"], kp["w1p"], kp["b1"], kp["w2"], kp["b2"])

    vmem = pl.BlockSpec(memory_space=pltpu.MemorySpace.VMEM)
    out = pl.pallas_call(
        conv_rnn_kernel,
        out_shape=jax.ShapeDtypeStruct((Bp, L), jnp.float32),
        in_specs=[vmem] * len(args),
        out_specs=vmem,
        scratch_shapes=[
            pltpu.VMEM((T * Bp, 8 * H), jnp.float32),   # gx (both directions)
            pltpu.VMEM((T * Bp, H), jnp.float32),       # seq_f (original time order)
            pltpu.VMEM((T * Bp, H), jnp.float32),       # seq_b (original time order)
        ],
    )(*args)
    return out[:B]


# -----------------------------------------------------------------------------
# Deterministic parameter init (natural PyTorch-equivalent layout).
# -----------------------------------------------------------------------------
def init_params(key, vocab, E, H, F, FC, L):
    ks = jax.random.split(key, 16)

    def u(k, shape, bound):
        return jax.random.uniform(k, shape, jnp.float32, -bound, bound)

    kH = 1.0 / np.sqrt(H)
    kC = 1.0 / np.sqrt(2 * H)          # conv fan-in = 1*1*2H
    k1 = 1.0 / np.sqrt(2 * H + F)
    k2 = 1.0 / np.sqrt(FC)

    p = {}
    p["embedding"] = jax.random.normal(ks[0], (vocab, E), jnp.float32)  # word_model
    # nn.LSTM(E, H, bidirectional=True): weight_ih (4H,E), weight_hh (4H,H), biases (4H,)
    p["wih_f"] = u(ks[1], (4 * H, E), kH).T                 # (E, 4H), gates [i,f,g,o]
    p["whh_f"] = u(ks[2], (4 * H, H), kH).T                 # (H, 4H)
    p["b_f"] = (u(ks[3], (4 * H,), kH) + u(ks[4], (4 * H,), kH))[None, :]
    p["wih_b"] = u(ks[5], (4 * H, E), kH).T
    p["whh_b"] = u(ks[6], (4 * H, H), kH).T
    p["b_b"] = (u(ks[7], (4 * H,), kH) + u(ks[8], (4 * H,), kH))[None, :]
    # nn.Conv2d(1, F, (1, 2H)): weight (F,1,1,2H) -> (F,2H), split fwd/bwd halves
    w_conv = u(ks[9], (F, 2 * H), kC)
    p["wcf"] = w_conv[:, :H].T                              # (H, F)
    p["wcb"] = w_conv[:, H:].T                              # (H, F)
    p["bc"] = u(ks[10], (F,), kC)[None, :]
    # fc1: (FC, 2H+F), fc2: (L, FC)
    p["w1"] = u(ks[11], (FC, 2 * H + F), k1).T              # (2H+F, FC)
    p["b1"] = u(ks[12], (FC,), k1)[None, :]
    p["w2"] = u(ks[13], (L, FC), k2).T                      # (FC, L)
    p["b2"] = u(ks[14], (L,), k2)[None, :]
    return p


# -----------------------------------------------------------------------------
# Pack params into the kernel layout (gate-interleaved block-diagonal weights).
# Column order of the 8H gate axis: [i_f, i_b, f_f, f_b, g_f, g_b, o_f, o_b].
# -----------------------------------------------------------------------------
def _interleave_gates(wf, wb, H):
    parts = []
    for gi in range(4):                       # PyTorch gate order i, f, g, o
        parts.append(wf[..., gi * H:(gi + 1) * H])
        parts.append(wb[..., gi * H:(gi + 1) * H])
    return jnp.concatenate(parts, axis=-1)


def pack_params(p):
    H = p["whh_f"].shape[0]
    E = p["wih_f"].shape[0]

    zE = jnp.zeros((E, 4 * H), jnp.float32)
    zH = jnp.zeros((H, 4 * H), jnp.float32)
    # Block-diagonal input weight: rows 0:E act on x(t) -> fwd gates,
    # rows E:2E act on x(T-1-t) -> bwd gates.
    wih_blk = _interleave_gates(jnp.concatenate([p["wih_f"], zE], axis=0),
                                jnp.concatenate([zE, p["wih_b"]], axis=0), H)
    # Block-diagonal recurrent weight: rows 0:H act on h_f, rows H:2H on h_b.
    whh_blk = _interleave_gates(jnp.concatenate([p["whh_f"], zH], axis=0),
                                jnp.concatenate([zH, p["whh_b"]], axis=0), H)
    bg = _interleave_gates(p["b_f"], p["b_b"], H)           # (1, 8H)

    return {
        "embedding": p["embedding"],
        "wih_blk": wih_blk, "whh_blk": whh_blk, "bg": bg,
        "wcf": p["wcf"], "wcb": p["wcb"], "bc": p["bc"],
        "w1h": p["w1"][:2 * H], "w1p": p["w1"][2 * H:], "b1": p["b1"],
        "w2": p["w2"], "b2": p["b2"],
    }


# -----------------------------------------------------------------------------
# Pure-JAX reference (mirrors PyTorch forward semantics) for a numeric check.
# -----------------------------------------------------------------------------
def reference_forward(tokens, p):
    x = p["embedding"][tokens].astype(jnp.float32)   # (B, T, E)
    B, T, E = x.shape
    H = p["whh_f"].shape[0]

    def lstm_dir(x_seq, wih, whh, b):
        def step(carry, x_t):
            h, c = carry
            g = x_t @ wih + h @ whh + b
            i = jax.nn.sigmoid(g[:, :H])
            f = jax.nn.sigmoid(g[:, H:2 * H])
            gg = jnp.tanh(g[:, 2 * H:3 * H])
            o = jax.nn.sigmoid(g[:, 3 * H:])
            c = f * c + i * gg
            h = o * jnp.tanh(c)
            return (h, c), h
        init = (jnp.zeros((B, H), jnp.float32), jnp.zeros((B, H), jnp.float32))
        (hT, _), seq = lax.scan(step, init, jnp.transpose(x_seq, (1, 0, 2)))
        return hT, jnp.transpose(seq, (1, 0, 2))     # (B, T, H)

    h_f, seq_f = lstm_dir(x, p["wih_f"], p["whh_f"], p["b_f"])
    h_b, seq_b_rev = lstm_dir(x[:, ::-1], p["wih_b"], p["whh_b"], p["b_b"])
    seq_b = seq_b_rev[:, ::-1]

    conv = seq_f @ p["wcf"] + seq_b @ p["wcb"] + p["bc"]   # (B, T, F)
    conv = jax.nn.relu(conv)
    pooled = conv.max(axis=1)                              # (B, F)
    feat = jnp.concatenate([h_f, h_b, pooled], axis=1)
    hid = jax.nn.relu(feat @ p["w1"] + p["b1"])
    return hid @ p["w2"] + p["b2"]


if __name__ == "__main__":
    # config: hidden_size=32, fc_size=64, mbatch_size=2, n_feature_maps=16,
    #         rnn_type='LSTM', n_labels=4, word_model.dim=32, seq_len=8, vocab=50
    B, T, E, H, F, FC, L, VOCAB = 2, 8, 32, 32, 16, 64, 4, 50

    key = jax.random.PRNGKey(0)
    params = init_params(key, VOCAB, E, H, F, FC, L)
    kernel_params = pack_params(params)          # packed once, outside the hot path
    tokens = jax.random.randint(jax.random.fold_in(key, 123), (B, T), 0, VOCAB)

    fwd = jax.jit(conv_rnn_forward_pallas)
    out = jax.block_until_ready(fwd(tokens, kernel_params))

    ref = reference_forward(tokens, params)
    # Default (single-pass) MXU precision now used on both sides; tolerance reflects
    # bf16-operand rounding through the T-step recurrence (gate math stays f32).
    np.testing.assert_allclose(np.asarray(out), np.asarray(ref), rtol=2e-2, atol=2e-2)

    print("KERNEL_OK")
</pallas_src>

<mosaic_0001>
module attributes {stable_mosaic.version = 11 : i64} {
  func.func @conv_rnn_kernel(%arg0: memref<64x64xf32, #tpu.memory_space<vmem>>, %arg1: memref<64x256xf32, #tpu.memory_space<vmem>>, %arg2: memref<64x256xf32, #tpu.memory_space<vmem>>, %arg3: memref<1x256xf32, #tpu.memory_space<vmem>>, %arg4: memref<32x16xf32, #tpu.memory_space<vmem>>, %arg5: memref<32x16xf32, #tpu.memory_space<vmem>>, %arg6: memref<1x16xf32, #tpu.memory_space<vmem>>, %arg7: memref<64x64xf32, #tpu.memory_space<vmem>>, %arg8: memref<16x64xf32, #tpu.memory_space<vmem>>, %arg9: memref<1x64xf32, #tpu.memory_space<vmem>>, %arg10: memref<64x4xf32, #tpu.memory_space<vmem>>, %arg11: memref<1x4xf32, #tpu.memory_space<vmem>>, %arg12: memref<8x4xf32, #tpu.memory_space<vmem>>, %arg13: memref<64x256xf32, #tpu.memory_space<vmem>>, %arg14: memref<64x32xf32, #tpu.memory_space<vmem>>, %arg15: memref<64x32xf32, #tpu.memory_space<vmem>>) attributes {dimension_semantics = [], scalar_prefetch = 0 : i64, scratch_operands = 3 : i64, tpu.core_type = #tpu.core_type<tc>} {
    %c0 = arith.constant 0 : index
    %c0_0 = arith.constant 0 : index
    %0 = vector.load %arg0[%c0, %c0_0] : memref<64x64xf32, #tpu.memory_space<vmem>>, vector<64x64xf32>
    %c0_1 = arith.constant 0 : index
    %c0_2 = arith.constant 0 : index
    %1 = vector.load %arg1[%c0_1, %c0_2] : memref<64x256xf32, #tpu.memory_space<vmem>>, vector<64x256xf32>
    %cst = arith.constant dense<0.000000e+00> : vector<64x256xf32>
    %2 = tpu.matmul %0, %1, %cst {dimension_numbers = #tpu.dot_dimension_numbers<[1], [0], [0], [1], [0, 0, 1, 1], [], []>} : vector<64x64xf32>, vector<64x256xf32>, vector<64x256xf32> -> vector<64x256xf32>
    %c0_3 = arith.constant 0 : index
    %c0_4 = arith.constant 0 : index
    %3 = vector.load %arg3[%c0_3, %c0_4] : memref<1x256xf32, #tpu.memory_space<vmem>>, vector<1x256xf32>
    %4 = vector.broadcast %3 : vector<1x256xf32> to vector<64x256xf32>
    %5 = arith.addf %2, %4 : vector<64x256xf32>
    %c0_5 = arith.constant 0 : index
    %c0_6 = arith.constant 0 : index
    %6 = vector.load %arg13[%c0_5, %c0_6] : memref<64x256xf32, #tpu.memory_space<vmem>>, vector<64x256xf32>
    tpu.vector_store %arg13[%c0_5, %c0_6], %5 {strides = array<i32>} : memref<64x256xf32, #tpu.memory_space<vmem>>, vector<64x256xf32>,
    %c0_7 = arith.constant 0 : index
    %c0_8 = arith.constant 0 : index
    %7 = vector.load %arg2[%c0_7, %c0_8] : memref<64x256xf32, #tpu.memory_space<vmem>>, vector<64x256xf32>
    %cst_9 = arith.constant 0.000000e+00 : f32
    %8 = vector.broadcast %cst_9 : f32 to vector<8x64xf32>
    %cst_10 = arith.constant 0.000000e+00 : f32
    %9 = vector.broadcast %cst_10 : f32 to vector<8x64xf32>
    %c0_11 = arith.constant 0 : index
    %c0_12 = arith.constant 0 : index
    %10 = vector.load %arg13[%c0_11, %c0_12] : memref<64x256xf32, #tpu.memory_space<vmem>>, vector<8x256xf32>
    %cst_13 = arith.constant dense<0.000000e+00> : vector<8x256xf32>
    %11 = tpu.matmul %8, %7, %cst_13 {dimension_numbers = #tpu.dot_dimension_numbers<[1], [0], [0], [1], [0, 0, 1, 1], [], []>} : vector<8x64xf32>, vector<64x256xf32>, vector<8x256xf32> -> vector<8x256xf32>
    %12 = arith.addf %10, %11 : vector<8x256xf32>
    %13 = arith.negf %12 : vector<8x256xf32>
    %14 = math.exp %13 : vector<8x256xf32>
    %cst_14 = arith.constant 1.000000e+00 : f32
    %15 = vector.broadcast %cst_14 : f32 to vector<8x256xf32>
    %16 = arith.addf %15, %14 : vector<8x256xf32>
    %17 = arith.divf %15, %16 : vector<8x256xf32>
    %18 = math.tanh %12 : vector<8x256xf32>
    %19 = vector.extract_strided_slice %17 {offsets = [0, 0], sizes = [8, 64], strides = [1, 1]} : vector<8x256xf32> to vector<8x64xf32>
    %20 = vector.extract_strided_slice %17 {offsets = [0, 64], sizes = [8, 64], strides = [1, 1]} : vector<8x256xf32> to vector<8x64xf32>
    %21 = vector.extract_strided_slice %18 {offsets = [0, 128], sizes = [8, 64], strides = [1, 1]} : vector<8x256xf32> to vector<8x64xf32>
    %22 = vector.extract_strided_slice %17 {offsets = [0, 192], sizes = [8, 64], strides = [1, 1]} : vector<8x256xf32> to vector<8x64xf32>
    %23 = arith.mulf %20, %9 : vector<8x64xf32>
    %24 = arith.mulf %19, %21 : vector<8x64xf32>
    %25 = arith.addf %23, %24 : vector<8x64xf32>
    %26 = math.tanh %25 : vector<8x64xf32>
    %27 = arith.mulf %22, %26 : vector<8x64xf32>
    %28 = vector.extract_strided_slice %27 {offsets = [0, 0], sizes = [8, 32], strides = [1, 1]} : vector<8x64xf32> to vector<8x32xf32>
    %c0_15 = arith.constant 0 : index
    %c0_16 = arith.constant 0 : index
    %29 = vector.load %arg14[%c0_15, %c0_16] : memref<64x32xf32, #tpu.memory_space<vmem>>, vector<8x32xf32>
    tpu.vector_store %arg14[%c0_15, %c0_16], %28 {strides = array<i32>} : memref<64x32xf32, #tpu.memory_space<vmem>>, vector<8x32xf32>,
    %30 = vector.extract_strided_slice %27 {offsets = [0, 32], sizes = [8, 32], strides = [1, 1]} : vector<8x64xf32> to vector<8x32xf32>
    %c56 = arith.constant 56 : index
    %c0_17 = arith.constant 0 : index
    %31 = vector.load %arg15[%c56, %c0_17] : memref<64x32xf32, #tpu.memory_space<vmem>>, vector<8x32xf32>
    tpu.vector_store %arg15[%c56, %c0_17], %30 {strides = array<i32>} : memref<64x32xf32, #tpu.memory_space<vmem>>, vector<8x32xf32>,
    %c8 = arith.constant 8 : index
    %c0_18 = arith.constant 0 : index
    %32 = vector.load %arg13[%c8, %c0_18] : memref<64x256xf32, #tpu.memory_space<vmem>>, vector<8x256xf32>
    %cst_19 = arith.constant dense<0.000000e+00> : vector<8x256xf32>
    %33 = tpu.matmul %27, %7, %cst_19 {dimension_numbers = #tpu.dot_dimension_numbers<[1], [0], [0], [1], [0, 0, 1, 1], [], []>} : vector<8x64xf32>, vector<64x256xf32>, vector<8x256xf32> -> vector<8x256xf32>
    %34 = arith.addf %32, %33 : vector<8x256xf32>
    %35 = arith.negf %34 : vector<8x256xf32>
    %36 = math.exp %35 : vector<8x256xf32>
    %cst_20 = arith.constant 1.000000e+00 : f32
    %37 = vector.broadcast %cst_20 : f32 to vector<8x256xf32>
    %38 = arith.addf %37, %36 : vector<8x256xf32>
    %39 = arith.divf %37, %38 : vector<8x256xf32>
    %40 = math.tanh %34 : vector<8x256xf32>
    %41 = vector.extract_strided_slice %39 {offsets = [0, 0], sizes = [8, 64], strides = [1, 1]} : vector<8x256xf32> to vector<8x64xf32>
    %42 = vector.extract_strided_slice %39 {offsets = [0, 64], sizes = [8, 64], strides = [1, 1]} : vector<8x256xf32> to vector<8x64xf32>
    %43 = vector.extract_strided_slice %40 {offsets = [0, 128], sizes = [8, 64], strides = [1, 1]} : vector<8x256xf32> to vector<8x64xf32>
    %44 = vector.extract_strided_slice %39 {offsets = [0, 192], sizes = [8, 64], strides = [1, 1]} : vector<8x256xf32> to vector<8x64xf32>
    %45 = arith.mulf %42, %25 : vector<8x64xf32>
    %46 = arith.mulf %41, %43 : vector<8x64xf32>
    %47 = arith.addf %45, %46 : vector<8x64xf32>
    %48 = math.tanh %47 : vector<8x64xf32>
    %49 = arith.mulf %44, %48 : vector<8x64xf32>
    %50 = vector.extract_strided_slice %49 {offsets = [0, 0], sizes = [8, 32], strides = [1, 1]} : vector<8x64xf32> to vector<8x32xf32>
    %c8_21 = arith.constant 8 : index
    %c0_22 = arith.constant 0 : index
    %51 = vector.load %arg14[%c8_21, %c0_22] : memref<64x32xf32, #tpu.memory_space<vmem>>, vector<8x32xf32>
    tpu.vector_store %arg14[%c8_21, %c0_22], %50 {strides = array<i32>} : memref<64x32xf32, #tpu.memory_space<vmem>>, vector<8x32xf32>,
    %52 = vector.extract_strided_slice %49 {offsets = [0, 32], sizes = [8, 32], strides = [1, 1]} : vector<8x64xf32> to vector<8x32xf32>
    %c48 = arith.constant 48 : index
    %c0_23 = arith.constant 0 : index
    %53 = vector.load %arg15[%c48, %c0_23] : memref<64x32xf32, #tpu.memory_space<vmem>>, vector<8x32xf32>
    tpu.vector_store %arg15[%c48, %c0_23], %52 {strides = array<i32>} : memref<64x32xf32, #tpu.memory_space<vmem>>, vector<8x32xf32>,
    %c16 = arith.constant 16 : index
    %c0_24 = arith.constant 0 : index
    %54 = vector.load %arg13[%c16, %c0_24] : memref<64x256xf32, #tpu.memory_space<vmem>>, vector<8x256xf32>
    %cst_25 = arith.constant dense<0.000000e+00> : vector<8x256xf32>
    %55 = tpu.matmul %49, %7, %cst_25 {dimension_numbers = #tpu.dot_dimension_numbers<[1], [0], [0], [1], [0, 0, 1, 1], [], []>} : vector<8x64xf32>, vector<64x256xf32>, vector<8x256xf32> -> vector<8x256xf32>
    %56 = arith.addf %54, %55 : vector<8x256xf32>
    %57 = arith.negf %56 : vector<8x256xf32>
    %58 = math.exp %57 : vector<8x256xf32>
    %cst_26 = arith.constant 1.000000e+00 : f32
    %59 = vector.broadcast %cst_26 : f32 to vector<8x256xf32>
    %60 = arith.addf %59, %58 : vector<8x256xf32>
    %61 = arith.divf %59, %60 : vector<8x256xf32>
    %62 = math.tanh %56 : vector<8x256xf32>
    %63 = vector.extract_strided_slice %61 {offsets = [0, 0], sizes = [8, 64], strides = [1, 1]} : vector<8x256xf32> to vector<8x64xf32>
    %64 = vector.extract_strided_slice %61 {offsets = [0, 64], sizes = [8, 64], strides = [1, 1]} : vector<8x256xf32> to vector<8x64xf32>
    %65 = vector.extract_strided_slice %62 {offsets = [0, 128], sizes = [8, 64], strides = [1, 1]} : vector<8x256xf32> to vector<8x64xf32>
    %66 = vector.extract_strided_slice %61 {offsets = [0, 192], sizes = [8, 64], strides = [1, 1]} : vector<8x256xf32> to vector<8x64xf32>
    %67 = arith.mulf %64, %47 : vector<8x64xf32>
    %68 = arith.mulf %63, %65 : vector<8x64xf32>
    %69 = arith.addf %67, %68 : vector<8x64xf32>
    %70 = math.tanh %69 : vector<8x64xf32>
    %71 = arith.mulf %66, %70 : vector<8x64xf32>
    %72 = vector.extract_strided_slice %71 {offsets = [0, 0], sizes = [8, 32], strides = [1, 1]} : vector<8x64xf32> to vector<8x32xf32>
    %c16_27 = arith.constant 16 : index
    %c0_28 = arith.constant 0 : index
    %73 = vector.load %arg14[%c16_27, %c0_28] : memref<64x32xf32, #tpu.memory_space<vmem>>, vector<8x32xf32>
    tpu.vector_store %arg14[%c16_27, %c0_28], %72 {strides = array<i32>} : memref<64x32xf32, #tpu.memory_space<vmem>>, vector<8x32xf32>,
    %74 = vector.extract_strided_slice %71 {offsets = [0, 32], sizes = [8, 32], strides = [1, 1]} : vector<8x64xf32> to vector<8x32xf32>
    %c40 = arith.constant 40 : index
    %c0_29 = arith.constant 0 : index
    %75 = vector.load %arg15[%c40, %c0_29] : memref<64x32xf32, #tpu.memory_space<vmem>>, vector<8x32xf32>
    tpu.vector_store %arg15[%c40, %c0_29], %74 {strides = array<i32>} : memref<64x32xf32, #tpu.memory_space<vmem>>, vector<8x32xf32>,
    %c24 = arith.constant 24 : index
    %c0_30 = arith.constant 0 : index
    %76 = vector.load %arg13[%c24, %c0_30] : memref<64x256xf32, #tpu.memory_space<vmem>>, vector<8x256xf32>
    %cst_31 = arith.constant dense<0.000000e+00> : vector<8x256xf32>
    %77 = tpu.matmul %71, %7, %cst_31 {dimension_numbers = #tpu.dot_dimension_numbers<[1], [0], [0], [1], [0, 0, 1, 1], [], []>} : vector<8x64xf32>, vector<64x256xf32>, vector<8x256xf32> -> vector<8x256xf32>
    %78 = arith.addf %76, %77 : vector<8x256xf32>
    %79 = arith.negf %78 : vector<8x256xf32>
    %80 = math.exp %79 : vector<8x256xf32>
    %cst_32 = arith.constant 1.000000e+00 : f32
    %81 = vector.broadcast %cst_32 : f32 to vector<8x256xf32>
    %82 = arith.addf %81, %80 : vector<8x256xf32>
    %83 = arith.divf %81, %82 : vector<8x256xf32>
    %84 = math.tanh %78 : vector<8x256xf32>
    %85 = vector.extract_strided_slice %83 {offsets = [0, 0], sizes = [8, 64], strides = [1, 1]} : vector<8x256xf32> to vector<8x64xf32>
    %86 = vector.extract_strided_slice %83 {offsets = [0, 64], sizes = [8, 64], strides = [1, 1]} : vector<8x256xf32> to vector<8x64xf32>
    %87 = vector.extract_strided_slice %84 {offsets = [0, 128], sizes = [8, 64], strides = [1, 1]} : vector<8x256xf32> to vector<8x64xf32>
    %88 = vector.extract_strided_slice %83 {offsets = [0, 192], sizes = [8, 64], strides = [1, 1]} : vector<8x256xf32> to vector<8x64xf32>
    %89 = arith.mulf %86, %69 : vector<8x64xf32>
    %90 = arith.mulf %85, %87 : vector<8x64xf32>
    %91 = arith.addf %89, %90 : vector<8x64xf32>
    %92 = math.tanh %91 : vector<8x64xf32>
    %93 = arith.mulf %88, %92 : vector<8x64xf32>
    %94 = vector.extract_strided_slice %93 {offsets = [0, 0], sizes = [8, 32], strides = [1, 1]} : vector<8x64xf32> to vector<8x32xf32>
    %c24_33 = arith.constant 24 : index
    %c0_34 = arith.constant 0 : index
    %95 = vector.load %arg14[%c24_33, %c0_34] : memref<64x32xf32, #tpu.memory_space<vmem>>, vector<8x32xf32>
    tpu.vector_store %arg14[%c24_33, %c0_34], %94 {strides = array<i32>} : memref<64x32xf32, #tpu.memory_space<vmem>>, vector<8x32xf32>,
    %96 = vector.extract_strided_slice %93 {offsets = [0, 32], sizes = [8, 32], strides = [1, 1]} : vector<8x64xf32> to vector<8x32xf32>
    %c32 = arith.constant 32 : index
    %c0_35 = arith.constant 0 : index
    %97 = vector.load %arg15[%c32, %c0_35] : memref<64x32xf32, #tpu.memory_space<vmem>>, vector<8x32xf32>
    tpu.vector_store %arg15[%c32, %c0_35], %96 {strides = array<i32>} : memref<64x32xf32, #tpu.memory_space<vmem>>, vector<8x32xf32>,
    %c32_36 = arith.constant 32 : index
    %c0_37 = arith.constant 0 : index
    %98 = vector.load %arg13[%c32_36, %c0_37] : memref<64x256xf32, #tpu.memory_space<vmem>>, vector<8x256xf32>
    %cst_38 = arith.constant dense<0.000000e+00> : vector<8x256xf32>
    %99 = tpu.matmul %93, %7, %cst_38 {dimension_numbers = #tpu.dot_dimension_numbers<[1], [0], [0], [1], [0, 0, 1, 1], [], []>} : vector<8x64xf32>, vector<64x256xf32>, vector<8x256xf32> -> vector<8x256xf32>
    %100 = arith.addf %98, %99 : vector<8x256xf32>
    %101 = arith.negf %100 : vector<8x256xf32>
    %102 = math.exp %101 : vector<8x256xf32>
    %cst_39 = arith.constant 1.000000e+00 : f32
    %103 = vector.broadcast %cst_39 : f32 to vector<8x256xf32>
    %104 = arith.addf %103, %102 : vector<8x256xf32>
    %105 = arith.divf %103, %104 : vector<8x256xf32>
    %106 = math.tanh %100 : vector<8x256xf32>
    %107 = vector.extract_strided_slice %105 {offsets = [0, 0], sizes = [8, 64], strides = [1, 1]} : vector<8x256xf32> to vector<8x64xf32>
    %108 = vector.extract_strided_slice %105 {offsets = [0, 64], sizes = [8, 64], strides = [1, 1]} : vector<8x256xf32> to vector<8x64xf32>
    %109 = vector.extract_strided_slice %106 {offsets = [0, 128], sizes = [8, 64], strides = [1, 1]} : vector<8x256xf32> to vector<8x64xf32>
    %110 = vector.extract_strided_slice %105 {offsets = [0, 192], sizes = [8, 64], strides = [1, 1]} : vector<8x256xf32> to vector<8x64xf32>
    %111 = arith.mulf %108, %91 : vector<8x64xf32>
    %112 = arith.mulf %107, %109 : vector<8x64xf32>
    %113 = arith.addf %111, %112 : vector<8x64xf32>
    %114 = math.tanh %113 : vector<8x64xf32>
    %115 = arith.mulf %110, %114 : vector<8x64xf32>
    %116 = vector.extract_strided_slice %115 {offsets = [0, 0], sizes = [8, 32], strides = [1, 1]} : vector<8x64xf32> to vector<8x32xf32>
    %c32_40 = arith.constant 32 : index
    %c0_41 = arith.constant 0 : index
    %117 = vector.load %arg14[%c32_40, %c0_41] : memref<64x32xf32, #tpu.memory_space<vmem>>, vector<8x32xf32>
    tpu.vector_store %arg14[%c32_40, %c0_41], %116 {strides = array<i32>} : memref<64x32xf32, #tpu.memory_space<vmem>>, vector<8x32xf32>,
    %118 = vector.extract_strided_slice %115 {offsets = [0, 32], sizes = [8, 32], strides = [1, 1]} : vector<8x64xf32> to vector<8x32xf32>
    %c24_42 = arith.constant 24 : index
    %c0_43 = arith.constant 0 : index
    %119 = vector.load %arg15[%c24_42, %c0_43] : memref<64x32xf32, #tpu.memory_space<vmem>>, vector<8x32xf32>
    tpu.vector_store %arg15[%c24_42, %c0_43], %118 {strides = array<i32>} : memref<64x32xf32, #tpu.memory_space<vmem>>, vector<8x32xf32>,
    %c40_44 = arith.constant 40 : index
    %c0_45 = arith.constant 0 : index
    %120 = vector.load %arg13[%c40_44, %c0_45] : memref<64x256xf32, #tpu.memory_space<vmem>>, vector<8x256xf32>
    %cst_46 = arith.constant dense<0.000000e+00> : vector<8x256xf32>
    %121 = tpu.matmul %115, %7, %cst_46 {dimension_numbers = #tpu.dot_dimension_numbers<[1], [0], [0], [1], [0, 0, 1, 1], [], []>} : vector<8x64xf32>, vector<64x256xf32>, vector<8x256xf32> -> vector<8x256xf32>
    %122 = arith.addf %120, %121 : vector<8x256xf32>
    %123 = arith.negf %122 : vector<8x256xf32>
    %124 = math.exp %123 : vector<8x256xf32>
    %cst_47 = arith.constant 1.000000e+00 : f32
    %125 = vector.broadcast %cst_47 : f32 to vector<8x256xf32>
    %126 = arith.addf %125, %124 : vector<8x256xf32>
    %127 = arith.divf %125, %126 : vector<8x256xf32>
    %128 = math.tanh %122 : vector<8x256xf32>
    %129 = vector.extract_strided_slice %127 {offsets = [0, 0], sizes = [8, 64], strides = [1, 1]} : vector<8x256xf32> to vector<8x64xf32>
    %130 = vector.extract_strided_slice %127 {offsets = [0, 64], sizes = [8, 64], strides = [1, 1]} : vector<8x256xf32> to vector<8x64xf32>
    %131 = vector.extract_strided_slice %128 {offsets = [0, 128], sizes = [8, 64], strides = [1, 1]} : vector<8x256xf32> to vector<8x64xf32>
    %132 = vector.extract_strided_slice %127 {offsets = [0, 192], sizes = [8, 64], strides = [1, 1]} : vector<8x256xf32> to vector<8x64xf32>
    %133 = arith.mulf %130, %113 : vector<8x64xf32>
    %134 = arith.mulf %129, %131 : vector<8x64xf32>
    %135 = arith.addf %133, %134 : vector<8x64xf32>
    %136 = math.tanh %135 : vector<8x64xf32>
    %137 = arith.mulf %132, %136 : vector<8x64xf32>
    %138 = vector.extract_strided_slice %137 {offsets = [0, 0], sizes = [8, 32], strides = [1, 1]} : vector<8x64xf32> to vector<8x32xf32>
    %c40_48 = arith.constant 40 : index
    %c0_49 = arith.constant 0 : index
    %139 = vector.load %arg14[%c40_48, %c0_49] : memref<64x32xf32, #tpu.memory_space<vmem>>, vector<8x32xf32>
    tpu.vector_store %arg14[%c40_48, %c0_49], %138 {strides = array<i32>} : memref<64x32xf32, #tpu.memory_space<vmem>>, vector<8x32xf32>,
    %140 = vector.extract_strided_slice %137 {offsets = [0, 32], sizes = [8, 32], strides = [1, 1]} : vector<8x64xf32> to vector<8x32xf32>
    %c16_50 = arith.constant 16 : index
    %c0_51 = arith.constant 0 : index
    %141 = vector.load %arg15[%c16_50, %c0_51] : memref<64x32xf32, #tpu.memory_space<vmem>>, vector<8x32xf32>
    tpu.vector_store %arg15[%c16_50, %c0_51], %140 {strides = array<i32>} : memref<64x32xf32, #tpu.memory_space<vmem>>, vector<8x32xf32>,
    %c48_52 = arith.constant 48 : index
    %c0_53 = arith.constant 0 : index
    %142 = vector.load %arg13[%c48_52, %c0_53] : memref<64x256xf32, #tpu.memory_space<vmem>>, vector<8x256xf32>
    %cst_54 = arith.constant dense<0.000000e+00> : vector<8x256xf32>
    %143 = tpu.matmul %137, %7, %cst_54 {dimension_numbers = #tpu.dot_dimension_numbers<[1], [0], [0], [1], [0, 0, 1, 1], [], []>} : vector<8x64xf32>, vector<64x256xf32>, vector<8x256xf32> -> vector<8x256xf32>
    %144 = arith.addf %142, %143 : vector<8x256xf32>
    %145 = arith.negf %144 : vector<8x256xf32>
    %146 = math.exp %145 : vector<8x256xf32>
    %cst_55 = arith.constant 1.000000e+00 : f32
    %147 = vector.broadcast %cst_55 : f32 to vector<8x256xf32>
    %148 = arith.addf %147, %146 : vector<8x256xf32>
    %149 = arith.divf %147, %148 : vector<8x256xf32>
    %150 = math.tanh %144 : vector<8x256xf32>
    %151 = vector.extract_strided_slice %149 {offsets = [0, 0], sizes = [8, 64], strides = [1, 1]} : vector<8x256xf32> to vector<8x64xf32>
    %152 = vector.extract_strided_slice %149 {offsets = [0, 64], sizes = [8, 64], strides = [1, 1]} : vector<8x256xf32> to vector<8x64xf32>
    %153 = vector.extract_strided_slice %150 {offsets = [0, 128], sizes = [8, 64], strides = [1, 1]} : vector<8x256xf32> to vector<8x64xf32>
    %154 = vector.extract_strided_slice %149 {offsets = [0, 192], sizes = [8, 64], strides = [1, 1]} : vector<8x256xf32> to vector<8x64xf32>
    %155 = arith.mulf %152, %135 : vector<8x64xf32>
    %156 = arith.mulf %151, %153 : vector<8x64xf32>
    %157 = arith.addf %155, %156 : vector<8x64xf32>
    %158 = math.tanh %157 : vector<8x64xf32>
    %159 = arith.mulf %154, %158 : vector<8x64xf32>
    %160 = vector.extract_strided_slice %159 {offsets = [0, 0], sizes = [8, 32], strides = [1, 1]} : vector<8x64xf32> to vector<8x32xf32>
    %c48_56 = arith.constant 48 : index
    %c0_57 = arith.constant 0 : index
    %161 = vector.load %arg14[%c48_56, %c0_57] : memref<64x32xf32, #tpu.memory_space<vmem>>, vector<8x32xf32>
    tpu.vector_store %arg14[%c48_56, %c0_57], %160 {strides = array<i32>} : memref<64x32xf32, #tpu.memory_space<vmem>>, vector<8x32xf32>,
    %162 = vector.extract_strided_slice %159 {offsets = [0, 32], sizes = [8, 32], strides = [1, 1]} : vector<8x64xf32> to vector<8x32xf32>
    %c8_58 = arith.constant 8 : index
    %c0_59 = arith.constant 0 : index
    %163 = vector.load %arg15[%c8_58, %c0_59] : memref<64x32xf32, #tpu.memory_space<vmem>>, vector<8x32xf32>
    tpu.vector_store %arg15[%c8_58, %c0_59], %162 {strides = array<i32>} : memref<64x32xf32, #tpu.memory_space<vmem>>, vector<8x32xf32>,
    %c56_60 = arith.constant 56 : index
    %c0_61 = arith.constant 0 : index
    %164 = vector.load %arg13[%c56_60, %c0_61] : memref<64x256xf32, #tpu.memory_space<vmem>>, vector<8x256xf32>
    %cst_62 = arith.constant dense<0.000000e+00> : vector<8x256xf32>
    %165 = tpu.matmul %159, %7, %cst_62 {dimension_numbers = #tpu.dot_dimension_numbers<[1], [0], [0], [1], [0, 0, 1, 1], [], []>} : vector<8x64xf32>, vector<64x256xf32>, vector<8x256xf32> -> vector<8x256xf32>
    %166 = arith.addf %164, %165 : vector<8x256xf32>
    %167 = arith.negf %166 : vector<8x256xf32>
    %168 = math.exp %167 : vector<8x256xf32>
    %cst_63 = arith.constant 1.000000e+00 : f32
    %169 = vector.broadcast %cst_63 : f32 to vector<8x256xf32>
    %170 = arith.addf %169, %168 : vector<8x256xf32>
    %171 = arith.divf %169, %170 : vector<8x256xf32>
    %172 = math.tanh %166 : vector<8x256xf32>
    %173 = vector.extract_strided_slice %171 {offsets = [0, 0], sizes = [8, 64], strides = [1, 1]} : vector<8x256xf32> to vector<8x64xf32>
    %174 = vector.extract_strided_slice %171 {offsets = [0, 64], sizes = [8, 64], strides = [1, 1]} : vector<8x256xf32> to vector<8x64xf32>
    %175 = vector.extract_strided_slice %172 {offsets = [0, 128], sizes = [8, 64], strides = [1, 1]} : vector<8x256xf32> to vector<8x64xf32>
    %176 = vector.extract_strided_slice %171 {offsets = [0, 192], sizes = [8, 64], strides = [1, 1]} : vector<8x256xf32> to vector<8x64xf32>
    %177 = arith.mulf %174, %157 : vector<8x64xf32>
    %178 = arith.mulf %173, %175 : vector<8x64xf32>
    %179 = arith.addf %177, %178 : vector<8x64xf32>
    %180 = math.tanh %179 : vector<8x64xf32>
    %181 = arith.mulf %176, %180 : vector<8x64xf32>
    %182 = vector.extract_strided_slice %181 {offsets = [0, 0], sizes = [8, 32], strides = [1, 1]} : vector<8x64xf32> to vector<8x32xf32>
    %c56_64 = arith.constant 56 : index
    %c0_65 = arith.constant 0 : index
    %183 = vector.load %arg14[%c56_64, %c0_65] : memref<64x32xf32, #tpu.memory_space<vmem>>, vector<8x32xf32>
    tpu.vector_store %arg14[%c56_64, %c0_65], %182 {strides = array<i32>} : memref<64x32xf32, #tpu.memory_space<vmem>>, vector<8x32xf32>,
    %184 = vector.extract_strided_slice %181 {offsets = [0, 32], sizes = [8, 32], strides = [1, 1]} : vector<8x64xf32> to vector<8x32xf32>
    %c0_66 = arith.constant 0 : index
    %c0_67 = arith.constant 0 : index
    %185 = vector.load %arg15[%c0_66, %c0_67] : memref<64x32xf32, #tpu.memory_space<vmem>>, vector<8x32xf32>
    tpu.vector_store %arg15[%c0_66, %c0_67], %184 {strides = array<i32>} : memref<64x32xf32, #tpu.memory_space<vmem>>, vector<8x32xf32>,
    %c0_68 = arith.constant 0 : index
    %c0_69 = arith.constant 0 : index
    %186 = vector.load %arg14[%c0_68, %c0_69] : memref<64x32xf32, #tpu.memory_space<vmem>>, vector<64x32xf32>
    %c0_70 = arith.constant 0 : index
    %c0_71 = arith.constant 0 : index
    %187 = vector.load %arg4[%c0_70, %c0_71] : memref<32x16xf32, #tpu.memory_space<vmem>>, vector<32x16xf32>
    %cst_72 = arith.constant dense<0.000000e+00> : vector<64x16xf32>
    %188 = tpu.matmul %186, %187, %cst_72 {dimension_numbers = #tpu.dot_dimension_numbers<[1], [0], [0], [1], [0, 0, 1, 1], [], []>} : vector<64x32xf32>, vector<32x16xf32>, vector<64x16xf32> -> vector<64x16xf32>
    %c0_73 = arith.constant 0 : index
    %c0_74 = arith.constant 0 : index
    %189 = vector.load %arg15[%c0_73, %c0_74] : memref<64x32xf32, #tpu.memory_space<vmem>>, vector<64x32xf32>
    %c0_75 = arith.constant 0 : index
    %c0_76 = arith.constant 0 : index
    %190 = vector.load %arg5[%c0_75, %c0_76] : memref<32x16xf32, #tpu.memory_space<vmem>>, vector<32x16xf32>
    %cst_77 = arith.constant dense<0.000000e+00> : vector<64x16xf32>
    %191 = tpu.matmul %189, %190, %cst_77 {dimension_numbers = #tpu.dot_dimension_numbers<[1], [0], [0], [1], [0, 0, 1, 1], [], []>} : vector<64x32xf32>, vector<32x16xf32>, vector<64x16xf32> -> vector<64x16xf32>
    %192 = arith.addf %188, %191 : vector<64x16xf32>
    %c0_78 = arith.constant 0 : index
    %c0_79 = arith.constant 0 : index
    %193 = vector.load %arg6[%c0_78, %c0_79] : memref<1x16xf32, #tpu.memory_space<vmem>>, vector<1x16xf32>
    %194 = vector.broadcast %193 : vector<1x16xf32> to vector<64x16xf32>
    %195 = arith.addf %192, %194 : vector<64x16xf32>
    %cst_80 = arith.constant 0.000000e+00 : f32
    %196 = vector.broadcast %cst_80 : f32 to vector<64x16xf32>
    %197 = arith.maximumf %195, %196 : vector<64x16xf32>
    %198 = vector.extract_strided_slice %197 {offsets = [0, 0], sizes = [8, 16], strides = [1, 1]} : vector<64x16xf32> to vector<8x16xf32>
    %199 = vector.extract_strided_slice %197 {offsets = [8, 0], sizes = [8, 16], strides = [1, 1]} : vector<64x16xf32> to vector<8x16xf32>
    %200 = arith.maximumf %198, %199 : vector<8x16xf32>
    %201 = vector.extract_strided_slice %197 {offsets = [16, 0], sizes = [8, 16], strides = [1, 1]} : vector<64x16xf32> to vector<8x16xf32>
    %202 = arith.maximumf %200, %201 : vector<8x16xf32>
    %203 = vector.extract_strided_slice %197 {offsets = [24, 0], sizes = [8, 16], strides = [1, 1]} : vector<64x16xf32> to vector<8x16xf32>
    %204 = arith.maximumf %202, %203 : vector<8x16xf32>
    %205 = vector.extract_strided_slice %197 {offsets = [32, 0], sizes = [8, 16], strides = [1, 1]} : vector<64x16xf32> to vector<8x16xf32>
    %206 = arith.maximumf %204, %205 : vector<8x16xf32>
    %207 = vector.extract_strided_slice %197 {offsets = [40, 0], sizes = [8, 16], strides = [1, 1]} : vector<64x16xf32> to vector<8x16xf32>
    %208 = arith.maximumf %206, %207 : vector<8x16xf32>
    %209 = vector.extract_strided_slice %197 {offsets = [48, 0], sizes = [8, 16], strides = [1, 1]} : vector<64x16xf32> to vector<8x16xf32>
    %210 = arith.maximumf %208, %209 : vector<8x16xf32>
    %211 = vector.extract_strided_slice %197 {offsets = [56, 0], sizes = [8, 16], strides = [1, 1]} : vector<64x16xf32> to vector<8x16xf32>
    %212 = arith.maximumf %210, %211 : vector<8x16xf32>
    %c0_81 = arith.constant 0 : index
    %c0_82 = arith.constant 0 : index
    %213 = vector.load %arg7[%c0_81, %c0_82] : memref<64x64xf32, #tpu.memory_space<vmem>>, vector<64x64xf32>
    %cst_83 = arith.constant dense<0.000000e+00> : vector<8x64xf32>
    %214 = tpu.matmul %181, %213, %cst_83 {dimension_numbers = #tpu.dot_dimension_numbers<[1], [0], [0], [1], [0, 0, 1, 1], [], []>} : vector<8x64xf32>, vector<64x64xf32>, vector<8x64xf32> -> vector<8x64xf32>
    %c0_84 = arith.constant 0 : index
    %c0_85 = arith.constant 0 : index
    %215 = vector.load %arg8[%c0_84, %c0_85] : memref<16x64xf32, #tpu.memory_space<vmem>>, vector<16x64xf32>
    %cst_86 = arith.constant dense<0.000000e+00> : vector<8x64xf32>
    %216 = tpu.matmul %212, %215, %cst_86 {dimension_numbers = #tpu.dot_dimension_numbers<[1], [0], [0], [1], [0, 0, 1, 1], [], []>} : vector<8x16xf32>, vector<16x64xf32>, vector<8x64xf32> -> vector<8x64xf32>
    %217 = arith.addf %214, %216 : vector<8x64xf32>
    %c0_87 = arith.constant 0 : index
    %c0_88 = arith.constant 0 : index
    %218 = vector.load %arg9[%c0_87, %c0_88] : memref<1x64xf32, #tpu.memory_space<vmem>>, vector<1x64xf32>
    %219 = vector.broadcast %218 : vector<1x64xf32> to vector<8x64xf32>
    %220 = arith.addf %217, %219 : vector<8x64xf32>
    %cst_89 = arith.constant 0.000000e+00 : f32
    %221 = vector.broadcast %cst_89 : f32 to vector<8x64xf32>
    %222 = arith.maximumf %220, %221 : vector<8x64xf32>
    %c0_90 = arith.constant 0 : index
    %c0_91 = arith.constant 0 : index
    %223 = vector.load %arg10[%c0_90, %c0_91] : memref<64x4xf32, #tpu.memory_space<vmem>>, vector<64x4xf32>
    %cst_92 = arith.constant dense<0.000000e+00> : vector<8x4xf32>
    %224 = tpu.matmul %222, %223, %cst_92 {dimension_numbers = #tpu.dot_dimension_numbers<[1], [0], [0], [1], [0, 0, 1, 1], [], []>} : vector<8x64xf32>, vector<64x4xf32>, vector<8x4xf32> -> vector<8x4xf32>
    %c0_93 = arith.constant 0 : index
    %c0_94 = arith.constant 0 : index
    %225 = vector.load %arg11[%c0_93, %c0_94] : memref<1x4xf32, #tpu.memory_space<vmem>>, vector<1x4xf32>
    %226 = vector.broadcast %225 : vector<1x4xf32> to vector<8x4xf32>
    %227 = arith.addf %224, %226 : vector<8x4xf32>
    %c0_95 = arith.constant 0 : index
    %c0_96 = arith.constant 0 : index
    %228 = vector.load %arg12[%c0_95, %c0_96] : memref<8x4xf32, #tpu.memory_space<vmem>>, vector<8x4xf32>
    tpu.vector_store %arg12[%c0_95, %c0_96], %227 {strides = array<i32>} : memref<8x4xf32, #tpu.memory_space<vmem>>, vector<8x4xf32>,
    return
  }
}

</mosaic_0001>

<llo_original>
// kernel: conv_rnn_forward_pallas.1
$region0: #{conv_rnn_forward_pallas.1}
  #allocation0 [shape = 'u32[]', space=smem, size = 0x4, offset = 0x4, fixed_abs, tag = 'smem constant byte address 0x4 - core index']
  #allocation1 [shape = 'u32[144,128]{1,0:T(1,128)}', space=vmem, size = 0x12000, scoped, tag = 'internal scratch']
  #allocation2 [shape = 'f32[64,256]{1,0:T(8,128)}', space=vmem, size = 0x10000, scoped, tag = 'scratch operand']
  #allocation3 [shape = 'f32[64,32]{1,0:T(8,128)}', space=vmem, size = 0x8000, scoped, tag = 'scratch operand']
  #allocation4 [shape = 'f32[64,32]{1,0:T(8,128)}', space=vmem, size = 0x8000, scoped, tag = 'scratch operand']
  %s0 = inlined_call_operand.vmem [shape: f32[64,64], index: 0, kind: input, shape index: {}]
  %s1 = inlined_call_operand.vmem [shape: f32[64,256], index: 1, kind: input, shape index: {}]
  %s2 = inlined_call_operand.vmem [shape: f32[64,256], index: 2, kind: input, shape index: {}]
  %s3 = inlined_call_operand.vmem [shape: f32[1,256], index: 3, kind: input, shape index: {}]
  %s4 = inlined_call_operand.vmem [shape: f32[32,16], index: 4, kind: input, shape index: {}]
  %s5 = inlined_call_operand.vmem [shape: f32[32,16], index: 5, kind: input, shape index: {}]
  %s6 = inlined_call_operand.vmem [shape: f32[1,16], index: 6, kind: input, shape index: {}]
  %s7 = inlined_call_operand.vmem [shape: f32[64,64], index: 7, kind: input, shape index: {}]
  %s8 = inlined_call_operand.vmem [shape: f32[16,64], index: 8, kind: input, shape index: {}]
  %s9 = inlined_call_operand.vmem [shape: f32[1,64], index: 9, kind: input, shape index: {}]
  %s10 = inlined_call_operand.vmem [shape: f32[64,4], index: 10, kind: input, shape index: {}]
  %s11 = inlined_call_operand.vmem [shape: f32[1,4], index: 11, kind: input, shape index: {}]
  %s12 = inlined_call_operand.vmem [shape: f32[8,4], index: 12, kind: output, shape index: {}]
  %s13 = sld [smem:[#allocation0]]
  $region58: #{conv_rnn_forward_pallas.1} parent=0
    _
  %s15 = ssub.s32 1, %s13
  %s16 = scalar_select 0, %s15, %s13
  // Predicated region
  $region2: #{conv_rnn_forward_pallas.1} parent=0 // pred_check
    _
  $region3: #{conv_rnn_forward_pallas.1} parent=0 // pred_check_branch
    %18 = sbr.rel (0) target = $region5
  $region4: #{conv_rnn_forward_pallas.1} parent=0 // pred_region
    _
  $region5: #{conv_rnn_forward_pallas.1} parent=0 // pred_fallthru
    _
  // Predicated region
  $region6: #{conv_rnn_forward_pallas.1} parent=0 // pred_check
    _
  $region7: #{conv_rnn_forward_pallas.1} parent=0 // pred_check_branch
    %20 = sbr.rel (0) target = $region9
  $region8: #{conv_rnn_forward_pallas.1} parent=0 // pred_region
    _
  $region9: #{conv_rnn_forward_pallas.1} parent=0 // pred_fallthru
    _
  // Predicated region
  $region10: #{conv_rnn_forward_pallas.1} parent=0 // pred_check
    _
  $region11: #{conv_rnn_forward_pallas.1} parent=0 // pred_check_branch
    %22 = sbr.rel (0) target = $region13
  $region12: #{conv_rnn_forward_pallas.1} parent=0 // pred_region
    _
  $region13: #{conv_rnn_forward_pallas.1} parent=0 // pred_fallthru
    _
  // Predicated region
  $region14: #{conv_rnn_forward_pallas.1} parent=0 // pred_check
    _
  $region15: #{conv_rnn_forward_pallas.1} parent=0 // pred_check_branch
    %24 = sbr.rel (0) target = $region17
  $region16: #{conv_rnn_forward_pallas.1} parent=0 // pred_region
    _
  $region17: #{conv_rnn_forward_pallas.1} parent=0 // pred_fallthru
    _
  // Predicated region
  $region18: #{conv_rnn_forward_pallas.1} parent=0 // pred_check
    _
  $region19: #{conv_rnn_forward_pallas.1} parent=0 // pred_check_branch
    %26 = sbr.rel (0) target = $region21
  $region20: #{conv_rnn_forward_pallas.1} parent=0 // pred_region
    _
  $region21: #{conv_rnn_forward_pallas.1} parent=0 // pred_fallthru
    _
  // Predicated region
  $region22: #{conv_rnn_forward_pallas.1} parent=0 // pred_check
    _
  $region23: #{conv_rnn_forward_pallas.1} parent=0 // pred_check_branch
    %28 = sbr.rel (0) target = $region25
  $region24: #{conv_rnn_forward_pallas.1} parent=0 // pred_region
    _
  $region25: #{conv_rnn_forward_pallas.1} parent=0 // pred_fallthru
    _
  // Predicated region
  $region26: #{conv_rnn_forward_pallas.1} parent=0 // pred_check
    _
  $region27: #{conv_rnn_forward_pallas.1} parent=0 // pred_check_branch
    %30 = sbr.rel (0) target = $region29
  $region28: #{conv_rnn_forward_pallas.1} parent=0 // pred_region
    _
  $region29: #{conv_rnn_forward_pallas.1} parent=0 // pred_fallthru
    _
  // Predicated region
  $region30: #{conv_rnn_forward_pallas.1} parent=0 // pred_check
    _
  $region31: #{conv_rnn_forward_pallas.1} parent=0 // pred_check_branch
    %32 = sbr.rel (0) target = $region33
  $region32: #{conv_rnn_forward_pallas.1} parent=0 // pred_region
    _
  $region33: #{conv_rnn_forward_pallas.1} parent=0 // pred_fallthru
    _
  // Predicated region
  $region34: #{conv_rnn_forward_pallas.1} parent=0 // pred_check
    _
  $region35: #{conv_rnn_forward_pallas.1} parent=0 // pred_check_branch
    %34 = sbr.rel (0) target = $region37
  $region36: #{conv_rnn_forward_pallas.1} parent=0 // pred_region
    _
  $region37: #{conv_rnn_forward_pallas.1} parent=0 // pred_fallthru
    _
  // Predicated region
  $region38: #{conv_rnn_forward_pallas.1} parent=0 // pred_check
    _
  $region39: #{conv_rnn_forward_pallas.1} parent=0 // pred_check_branch
    %36 = sbr.rel (0) target = $region41
  $region40: #{conv_rnn_forward_pallas.1} parent=0 // pred_region
    _
  $region41: #{conv_rnn_forward_pallas.1} parent=0 // pred_fallthru
    _
  // Predicated region
  $region42: #{conv_rnn_forward_pallas.1} parent=0 // pred_check
    _
  $region43: #{conv_rnn_forward_pallas.1} parent=0 // pred_check_branch
    %38 = sbr.rel (0) target = $region45
  $region44: #{conv_rnn_forward_pallas.1} parent=0 // pred_region
    _
  $region45: #{conv_rnn_forward_pallas.1} parent=0 // pred_fallthru
    _
  // Predicated region
  $region46: #{conv_rnn_forward_pallas.1} parent=0 // pred_check
    _
  $region47: #{conv_rnn_forward_pallas.1} parent=0 // pred_check_branch
    %40 = sbr.rel (0) target = $region49
  $region48: #{conv_rnn_forward_pallas.1} parent=0 // pred_region
    _
  $region49: #{conv_rnn_forward_pallas.1} parent=0 // pred_fallthru
    _
  %v41 = vld [vmem:[%s0] sm:$0xff]
  %v42 = vld [vmem:[%s0 + $0x8] sm:$0xff]
  %v43 = vld [vmem:[%s0 + $0x10] sm:$0xff]
  %v44 = vld [vmem:[%s0 + $0x18] sm:$0xff]
  %v45 = vld [vmem:[%s0 + $0x20] sm:$0xff]
  %v46 = vld [vmem:[%s0 + $0x28] sm:$0xff]
  %v47 = vld [vmem:[%s0 + $0x30] sm:$0xff]
  %v48 = vld [vmem:[%s0 + $0x38] sm:$0xff]
  %v49 = vld [vmem:[%s1] sm:$0xff]
  %v50 = vld [vmem:[%s1 + $0x8] sm:$0xff]
  %v51 = vld [vmem:[%s1 + $0x10] sm:$0xff]
  %v52 = vld [vmem:[%s1 + $0x18] sm:$0xff]
  %v53 = vld [vmem:[%s1 + $0x20] sm:$0xff]
  %v54 = vld [vmem:[%s1 + $0x28] sm:$0xff]
  %v55 = vld [vmem:[%s1 + $0x30] sm:$0xff]
  %v56 = vld [vmem:[%s1 + $0x38] sm:$0xff]
  %v57 = vld [vmem:[%s1 + $0x40] sm:$0xff]
  %v58 = vld [vmem:[%s1 + $0x48] sm:$0xff]
  %v59 = vld [vmem:[%s1 + $0x50] sm:$0xff]
  %v60 = vld [vmem:[%s1 + $0x58] sm:$0xff]
  %v61 = vld [vmem:[%s1 + $0x60] sm:$0xff]
  %v62 = vld [vmem:[%s1 + $0x68] sm:$0xff]
  %v63 = vld [vmem:[%s1 + $0x70] sm:$0xff]
  %v64 = vld [vmem:[%s1 + $0x78] sm:$0xff]
  %v65 = vld [vmem:[%s3] sm:$0x3]
  %v67 = vlaneseq
  %v68 = vshrl.u32 %v67, 7
  %v69 = vsub.s32 0, %v68
  %v70 = vrot.slane %v65, %v69
  %v71 = vlaneseq
  %v72 = vshrl.u32 %v71, 7
  %v73 = vsub.s32 1, %v72
  %v74 = vrot.slane %v65, %v73
  %vm77 = vcmask 523264
  %v79 = vsel %vm77, %v41, 0
  %v82 = vsel %vm77, %v42, 0
  %v85 = vsel %vm77, %v43, 0
  %v88 = vsel %vm77, %v44, 0
  %v91 = vsel %vm77, %v45, 0
  %v94 = vsel %vm77, %v46, 0
  %v97 = vsel %vm77, %v47, 0
  %v100 = vsel %vm77, %v48, 0
  %102 = vmatprep.subr.mxu0 0.0
  %103 = vmatpush1.msra.mxu0 0.0
  %104 = vmatprep.subr.mxu0 0.0
  %105 = vmatpush1.msra.mxu0 0.0
  %106 = vmatprep.subr.mxu0 0.0
  %107 = vmatpush1.msra.mxu0 0.0
  %108 = vmatprep.subr.mxu0 0.0
  %109 = vmatpush1.msra.mxu0 0.0
  %110 = vmatprep.subr.mxu0 0.0
  %111 = vmatpush1.msra.mxu0 0.0
  %112 = vmatprep.subr.mxu0 0.0
  %113 = vmatpush1.msra.mxu0 0.0
  %114 = vmatprep.subr.mxu0 0.0
  %115 = vmatpush1.msra.mxu0 0.0
  %116 = vmatprep.subr.mxu0 0.0
  %117 = vmatpush1.msra.mxu0 0.0
  %118 = vmatprep.subr.mxu0 %v64
  %119 = vmatpush1.msra.mxu0 %v63
  %120 = vmatprep.subr.mxu0 %v62
  %121 = vmatpush1.msra.mxu0 %v61
  %122 = vmatprep.subr.mxu0 %v60
  %123 = vmatpush1.msra.mxu0 %v59
  %124 = vmatprep.subr.mxu0 %v58
  %125 = vmatpush1.msra.mxu0 %v57
  %126 = vmatprep.subr.mxu0 %v56
  %127 = vmatpush1.msra.mxu0 %v55
  %128 = vmatprep.subr.mxu0 %v54
  %129 = vmatpush1.msra.mxu0 %v53
  %130 = vmatprep.subr.mxu0 %v52
  %131 = vmatpush1.msra.mxu0 %v51
  %132 = vmatprep.subr.mxu0 %v50
  %133 = vmatpush1.msra.mxu0 %v49
  %134 = vmatprep.subr.mxu0 0.0
  %135 = vmatpush2.msra.mxu0 0.0
  %136 = vmatprep.subr.mxu0 0.0
  %137 = vmatpush2.msra.mxu0 0.0
  %138 = vmatprep.subr.mxu0 0.0
  %139 = vmatpush2.msra.mxu0 0.0
  %140 = vmatprep.subr.mxu0 0.0
  %141 = vmatpush2.msra.mxu0 0.0
  %142 = vmatprep.subr.mxu0 0.0
  %143 = vmatpush2.msra.mxu0 0.0
  %144 = vmatprep.subr.mxu0 0.0
  %145 = vmatpush2.msra.mxu0 0.0
  %146 = vmatprep.subr.mxu0 0.0
  %147 = vmatpush2.msra.mxu0 0.0
  %148 = vmatprep.subr.mxu0 0.0
  %149 = vmatpush2.msra.mxu0 0.0
  %150 = vmatprep.subr.mxu0 0.0
  %151 = vmatpush2.msra.mxu0 0.0
  %152 = vmatprep.subr.mxu0 0.0
  %153 = vmatpush2.msra.mxu0 0.0
  %154 = vmatprep.subr.mxu0 0.0
  %155 = vmatpush2.msra.mxu0 0.0
  %156 = vmatprep.subr.mxu0 0.0
  %157 = vmatpush2.msra.mxu0 0.0
  %158 = vmatprep.subr.mxu0 0.0
  %159 = vmatpush2.msra.mxu0 0.0
  %160 = vmatprep.subr.mxu0 0.0
  %161 = vmatpush2.msra.mxu0 0.0
  %162 = vmatprep.subr.mxu0 0.0
  %163 = vmatpush2.msra.mxu0 0.0
  %164 = vmatprep.subr.mxu0 0.0
  %165 = vmatpush2.msra.mxu0 0.0
  %166 = vmatprep.mubr.f32.mxu0 0.0
  %167 = vmatmul.mubr.f32.gmra.mxu0 %v79
  %v168 = vpop.f32.mrf.mxu0
  %v169 = vadd.f32 %v70, %v168
  %v170 = vpop.f32.mrf.mxu0
  %v171 = vadd.f32 %v74, %v170
  %172 = vmatprep.mubr.f32.mxu0 0.0
  %173 = vmatmul.mubr.f32.gmra.mxu0 %v82
  %v174 = vpop.f32.mrf.mxu0
  %v175 = vadd.f32 %v70, %v174
  %v176 = vpop.f32.mrf.mxu0
  %v177 = vadd.f32 %v74, %v176
  %178 = vmatprep.mubr.f32.mxu0 0.0
  %179 = vmatmul.mubr.f32.gmra.mxu0 %v85
  %v180 = vpop.f32.mrf.mxu0
  %v181 = vadd.f32 %v70, %v180
  %v182 = vpop.f32.mrf.mxu0
  %v183 = vadd.f32 %v74, %v182
  %184 = vmatprep.mubr.f32.mxu0 0.0
  %185 = vmatmul.mubr.f32.gmra.mxu0 %v88
  %v186 = vpop.f32.mrf.mxu0
  %v187 = vadd.f32 %v70, %v186
  %v188 = vpop.f32.mrf.mxu0
  %v189 = vadd.f32 %v74, %v188
  %190 = vmatprep.mubr.f32.mxu0 0.0
  %191 = vmatmul.mubr.f32.gmra.mxu0 %v91
  %v192 = vpop.f32.mrf.mxu0
  %v193 = vadd.f32 %v70, %v192
  %v194 = vpop.f32.mrf.mxu0
  %v195 = vadd.f32 %v74, %v194
  %196 = vmatprep.mubr.f32.mxu0 0.0
  %197 = vmatmul.mubr.f32.gmra.mxu0 %v94
  %v198 = vpop.f32.mrf.mxu0
  %v199 = vadd.f32 %v70, %v198
  %v200 = vpop.f32.mrf.mxu0
  %v201 = vadd.f32 %v74, %v200
  %202 = vmatprep.mubr.f32.mxu0 0.0
  %203 = vmatmul.mubr.f32.gmra.mxu0 %v97
  %v204 = vpop.f32.mrf.mxu0
  %v205 = vadd.f32 %v70, %v204
  %v206 = vpop.f32.mrf.mxu0
  %v207 = vadd.f32 %v74, %v206
  %208 = vmatprep.mubr.f32.mxu0 0.0
  %209 = vmatmul.mubr.f32.gmra.mxu0 %v100
  %v210 = vpop.f32.mrf.mxu0
  %v211 = vadd.f32 %v70, %v210
  %v212 = vpop.f32.mrf.mxu0
  %v213 = vadd.f32 %v74, %v212
  %214 = vdwg.mxu0
  %215 = vst [vmem:[#allocation2] sm:$0xff] %v169
  %216 = vst [vmem:[#allocation2 + $0x8] sm:$0xff] %v171
  %217 = vst [vmem:[#allocation2 + $0x10] sm:$0xff] %v175
  %218 = vst [vmem:[#allocation2 + $0x18] sm:$0xff] %v177
  %219 = vst [vmem:[#allocation2 + $0x20] sm:$0xff] %v181
  %220 = vst [vmem:[#allocation2 + $0x28] sm:$0xff] %v183
  %221 = vst [vmem:[#allocation2 + $0x30] sm:$0xff] %v187
  %222 = vst [vmem:[#allocation2 + $0x38] sm:$0xff] %v189
  %223 = vst [vmem:[#allocation2 + $0x40] sm:$0xff] %v193
  %224 = vst [vmem:[#allocation2 + $0x48] sm:$0xff] %v195
  %225 = vst [vmem:[#allocation2 + $0x50] sm:$0xff] %v199
  %226 = vst [vmem:[#allocation2 + $0x58] sm:$0xff] %v201
  %227 = vst [vmem:[#allocation2 + $0x60] sm:$0xff] %v205
  %228 = vst [vmem:[#allocation2 + $0x68] sm:$0xff] %v207
  %229 = vst [vmem:[#allocation2 + $0x70] sm:$0xff] %v211
  %230 = vst [vmem:[#allocation2 + $0x78] sm:$0xff] %v213
  %v231 = vld [vmem:[%s2] sm:$0xff]
  %v232 = vld [vmem:[%s2 + $0x8] sm:$0xff]
  %v233 = vld [vmem:[%s2 + $0x10] sm:$0xff]
  %v234 = vld [vmem:[%s2 + $0x18] sm:$0xff]
  %v235 = vld [vmem:[%s2 + $0x20] sm:$0xff]
  %v236 = vld [vmem:[%s2 + $0x28] sm:$0xff]
  %v237 = vld [vmem:[%s2 + $0x30] sm:$0xff]
  %v238 = vld [vmem:[%s2 + $0x38] sm:$0xff]
  %v239 = vld [vmem:[%s2 + $0x40] sm:$0xff]
  %v240 = vld [vmem:[%s2 + $0x48] sm:$0xff]
  %v241 = vld [vmem:[%s2 + $0x50] sm:$0xff]
  %v242 = vld [vmem:[%s2 + $0x58] sm:$0xff]
  %v243 = vld [vmem:[%s2 + $0x60] sm:$0xff]
  %v244 = vld [vmem:[%s2 + $0x68] sm:$0xff]
  %v245 = vld [vmem:[%s2 + $0x70] sm:$0xff]
  %v246 = vld [vmem:[%s2 + $0x78] sm:$0xff]
  %v247 = vld [vmem:[#allocation2] sm:$0xff]
  %v248 = vld [vmem:[#allocation2 + $0x8] sm:$0xff]
  %v250 = vsel %vm77, 0.0, 0
  %252 = vmatprep.subr.mxu0 0.0
  %253 = vmatpush1.msra.mxu0 0.0
  %254 = vmatprep.subr.mxu0 0.0
  %255 = vmatpush1.msra.mxu0 0.0
  %256 = vmatprep.subr.mxu0 0.0
  %257 = vmatpush1.msra.mxu0 0.0
  %258 = vmatprep.subr.mxu0 0.0
  %259 = vmatpush1.msra.mxu0 0.0
  %260 = vmatprep.subr.mxu0 0.0
  %261 = vmatpush1.msra.mxu0 0.0
  %262 = vmatprep.subr.mxu0 0.0
  %263 = vmatpush1.msra.mxu0 0.0
  %264 = vmatprep.subr.mxu0 0.0
  %265 = vmatpush1.msra.mxu0 0.0
  %266 = vmatprep.subr.mxu0 0.0
  %267 = vmatpush1.msra.mxu0 0.0
  %268 = vmatprep.subr.mxu0 %v246
  %269 = vmatpush1.msra.mxu0 %v245
  %270 = vmatprep.subr.mxu0 %v244
  %271 = vmatpush1.msra.mxu0 %v243
  %272 = vmatprep.subr.mxu0 %v242
  %273 = vmatpush1.msra.mxu0 %v241
  %274 = vmatprep.subr.mxu0 %v240
  %275 = vmatpush1.msra.mxu0 %v239
  %276 = vmatprep.subr.mxu0 %v238
  %277 = vmatpush1.msra.mxu0 %v237
  %278 = vmatprep.subr.mxu0 %v236
  %279 = vmatpush1.msra.mxu0 %v235
  %280 = vmatprep.subr.mxu0 %v234
  %281 = vmatpush1.msra.mxu0 %v233
  %282 = vmatprep.subr.mxu0 %v232
  %283 = vmatpush1.msra.mxu0 %v231
  %284 = vmatprep.subr.mxu0 0.0
  %285 = vmatpush2.msra.mxu0 0.0
  %286 = vmatprep.subr.mxu0 0.0
  %287 = vmatpush2.msra.mxu0 0.0
  %288 = vmatprep.subr.mxu0 0.0
  %289 = vmatpush2.msra.mxu0 0.0
  %290 = vmatprep.subr.mxu0 0.0
  %291 = vmatpush2.msra.mxu0 0.0
  %292 = vmatprep.subr.mxu0 0.0
  %293 = vmatpush2.msra.mxu0 0.0
  %294 = vmatprep.subr.mxu0 0.0
  %295 = vmatpush2.msra.mxu0 0.0
  %296 = vmatprep.subr.mxu0 0.0
  %297 = vmatpush2.msra.mxu0 0.0
  %298 = vmatprep.subr.mxu0 0.0
  %299 = vmatpush2.msra.mxu0 0.0
  %300 = vmatprep.subr.mxu0 0.0
  %301 = vmatpush2.msra.mxu0 0.0
  %302 = vmatprep.subr.mxu0 0.0
  %303 = vmatpush2.msra.mxu0 0.0
  %304 = vmatprep.subr.mxu0 0.0
  %305 = vmatpush2.msra.mxu0 0.0
  %306 = vmatprep.subr.mxu0 0.0
  %307 = vmatpush2.msra.mxu0 0.0
  %308 = vmatprep.subr.mxu0 0.0
  %309 = vmatpush2.msra.mxu0 0.0
  %310 = vmatprep.subr.mxu0 0.0
  %311 = vmatpush2.msra.mxu0 0.0
  %312 = vmatprep.subr.mxu0 0.0
  %313 = vmatpush2.msra.mxu0 0.0
  %314 = vmatprep.subr.mxu0 0.0
  %315 = vmatpush2.msra.mxu0 0.0
  %316 = vmatprep.mubr.f32.mxu0 0.0
  %317 = vmatmul.mubr.f32.gmra.mxu0 %v250
  %v318 = vpop.f32.mrf.mxu0
  %v319 = vadd.f32 0.0, %v318
  %v320 = vpop.f32.mrf.mxu0
  %v321 = vadd.f32 0.0, %v320
  %322 = vdwg.mxu0
  %v323 = vadd.f32 %v247, %v319
  %v324 = vadd.f32 %v248, %v321
  %v325 = vxor.u32 %v323, 2147483648
  %v326 = vxor.u32 %v324, 2147483648
  %v327 = vmul.f32 %v325, 1.442695
  %v328 = vpow.pop %v327
  %v329 = vmul.f32 %v326, 1.442695
  %v330 = vpow.pop %v329
  %v331 = vadd.f32 %v328, 1.0
  %v332 = vadd.f32 %v330, 1.0
  %v333 = vrcp.pop %v331
  %v334 = vmul.f32 1.0, %v333
  %v335 = vrcp.pop %v332
  %v336 = vmul.f32 1.0, %v335
  %v337 = vtanh.pop %v324
  %v338 = vmul.f32 %v334, 0.0
  %v339 = vmul.f32 %v334, %v337
  %341 = vrot.lane.b32.xlu0 %v339, 64
  %v342 = vpop.permute.xlu0 %341
  %v344 = vadd.f32 %v338, %v342
  %v345 = vtanh.pop %v344
  %v346 = vmul.f32 %v336, %v345
  %348 = vrot.lane.b32.xlu0 %v346, 64
  %v349 = vpop.permute.xlu0 %348
  %vm351 = vcmask 261120
  %352 = vst.msk [vmem:[#allocation3] sm:$0xff] %vm351, %v349
  %353 = vrot.lane.b32.xlu0 %v346, 32
  %v354 = vpop.permute.xlu0 %353
  %356 = vst.msk [vmem:[#allocation4 + $0x38] sm:$0xff] %vm351, %v354
  %v357 = vld [vmem:[#allocation2 + $0x10] sm:$0xff]
  %v358 = vld [vmem:[#allocation2 + $0x18] sm:$0xff]
  %v359 = vsel %vm77, %v349, 0
  %361 = vmatprep.subr.mxu0 0.0
  %362 = vmatpush1.msra.mxu0 0.0
  %363 = vmatprep.subr.mxu0 0.0
  %364 = vmatpush1.msra.mxu0 0.0
  %365 = vmatprep.subr.mxu0 0.0
  %366 = vmatpush1.msra.mxu0 0.0
  %367 = vmatprep.subr.mxu0 0.0
  %368 = vmatpush1.msra.mxu0 0.0
  %369 = vmatprep.subr.mxu0 0.0
  %370 = vmatpush1.msra.mxu0 0.0
  %371 = vmatprep.subr.mxu0 0.0
  %372 = vmatpush1.msra.mxu0 0.0
  %373 = vmatprep.subr.mxu0 0.0
  %374 = vmatpush1.msra.mxu0 0.0
  %375 = vmatprep.subr.mxu0 0.0
  %376 = vmatpush1.msra.mxu0 0.0
  %377 = vmatprep.subr.mxu0 %v246
  %378 = vmatpush1.msra.mxu0 %v245
  %379 = vmatprep.subr.mxu0 %v244
  %380 = vmatpush1.msra.mxu0 %v243
  %381 = vmatprep.subr.mxu0 %v242
  %382 = vmatpush1.msra.mxu0 %v241
  %383 = vmatprep.subr.mxu0 %v240
  %384 = vmatpush1.msra.mxu0 %v239
  %385 = vmatprep.subr.mxu0 %v238
  %386 = vmatpush1.msra.mxu0 %v237
  %387 = vmatprep.subr.mxu0 %v236
  %388 = vmatpush1.msra.mxu0 %v235
  %389 = vmatprep.subr.mxu0 %v234
  %390 = vmatpush1.msra.mxu0 %v233
  %391 = vmatprep.subr.mxu0 %v232
  %392 = vmatpush1.msra.mxu0 %v231
  %393 = vmatprep.subr.mxu0 0.0
  %394 = vmatpush2.msra.mxu0 0.0
  %395 = vmatprep.subr.mxu0 0.0
  %396 = vmatpush2.msra.mxu0 0.0
  %397 = vmatprep.subr.mxu0 0.0
  %398 = vmatpush2.msra.mxu0 0.0
  %399 = vmatprep.subr.mxu0 0.0
  %400 = vmatpush2.msra.mxu0 0.0
  %401 = vmatprep.subr.mxu0 0.0
  %402 = vmatpush2.msra.mxu0 0.0
  %403 = vmatprep.subr.mxu0 0.0
  %404 = vmatpush2.msra.mxu0 0.0
  %405 = vmatprep.subr.mxu0 0.0
  %406 = vmatpush2.msra.mxu0 0.0
  %407 = vmatprep.subr.mxu0 0.0
  %408 = vmatpush2.msra.mxu0 0.0
  %409 = vmatprep.subr.mxu0 0.0
  %410 = vmatpush2.msra.mxu0 0.0
  %411 = vmatprep.subr.mxu0 0.0
  %412 = vmatpush2.msra.mxu0 0.0
  %413 = vmatprep.subr.mxu0 0.0
  %414 = vmatpush2.msra.mxu0 0.0
  %415 = vmatprep.subr.mxu0 0.0
  %416 = vmatpush2.msra.mxu0 0.0
  %417 = vmatprep.subr.mxu0 0.0
  %418 = vmatpush2.msra.mxu0 0.0
  %419 = vmatprep.subr.mxu0 0.0
  %420 = vmatpush2.msra.mxu0 0.0
  %421 = vmatprep.subr.mxu0 0.0
  %422 = vmatpush2.msra.mxu0 0.0
  %423 = vmatprep.subr.mxu0 0.0
  %424 = vmatpush2.msra.mxu0 0.0
  %425 = vmatprep.mubr.f32.mxu0 0.0
  %426 = vmatmul.mubr.f32.gmra.mxu0 %v359
  %v427 = vpop.f32.mrf.mxu0
  %v428 = vadd.f32 0.0, %v427
  %v429 = vpop.f32.mrf.mxu0
  %v430 = vadd.f32 0.0, %v429
  %431 = vdwg.mxu0
  %v432 = vadd.f32 %v357, %v428
  %v433 = vadd.f32 %v358, %v430
  %v434 = vxor.u32 %v432, 2147483648
  %v435 = vxor.u32 %v433, 2147483648
  %v436 = vmul.f32 %v434, 1.442695
  %v437 = vpow.pop %v436
  %v438 = vmul.f32 %v435, 1.442695
  %v439 = vpow.pop %v438
  %v440 = vadd.f32 %v437, 1.0
  %v441 = vadd.f32 %v439, 1.0
  %v442 = vrcp.pop %v440
  %v443 = vmul.f32 1.0, %v442
  %v444 = vrcp.pop %v441
  %v445 = vmul.f32 1.0, %v444
  %v446 = vtanh.pop %v433
  %v447 = vmul.f32 %v443, %v344
  %v448 = vmul.f32 %v443, %v446
  %450 = vrot.lane.b32.xlu0 %v448, 64
  %v451 = vpop.permute.xlu0 %450
  %v453 = vadd.f32 %v447, %v451
  %v454 = vtanh.pop %v453
  %v455 = vmul.f32 %v445, %v454
  %457 = vrot.lane.b32.xlu0 %v455, 64
  %v458 = vpop.permute.xlu0 %457
  %460 = vst.msk [vmem:[#allocation3 + $0x8] sm:$0xff] %vm351, %v458
  %461 = vrot.lane.b32.xlu0 %v455, 32
  %v462 = vpop.permute.xlu0 %461
  %464 = vst.msk [vmem:[#allocation4 + $0x30] sm:$0xff] %vm351, %v462
  %v465 = vld [vmem:[#allocation2 + $0x20] sm:$0xff]
  %v466 = vld [vmem:[#allocation2 + $0x28] sm:$0xff]
  %v467 = vsel %vm77, %v458, 0
  %469 = vmatprep.subr.mxu0 0.0
  %470 = vmatpush1.msra.mxu0 0.0
  %471 = vmatprep.subr.mxu0 0.0
  %472 = vmatpush1.msra.mxu0 0.0
  %473 = vmatprep.subr.mxu0 0.0
  %474 = vmatpush1.msra.mxu0 0.0
  %475 = vmatprep.subr.mxu0 0.0
  %476 = vmatpush1.msra.mxu0 0.0
  %477 = vmatprep.subr.mxu0 0.0
  %478 = vmatpush1.msra.mxu0 0.0
  %479 = vmatprep.subr.mxu0 0.0
  %480 = vmatpush1.msra.mxu0 0.0
  %481 = vmatprep.subr.mxu0 0.0
  %482 = vmatpush1.msra.mxu0 0.0
  %483 = vmatprep.subr.mxu0 0.0
  %484 = vmatpush1.msra.mxu0 0.0
  %485 = vmatprep.subr.mxu0 %v246
  %486 = vmatpush1.msra.mxu0 %v245
  %487 = vmatprep.subr.mxu0 %v244
  %488 = vmatpush1.msra.mxu0 %v243
  %489 = vmatprep.subr.mxu0 %v242
  %490 = vmatpush1.msra.mxu0 %v241
  %491 = vmatprep.subr.mxu0 %v240
  %492 = vmatpush1.msra.mxu0 %v239
  %493 = vmatprep.subr.mxu0 %v238
  %494 = vmatpush1.msra.mxu0 %v237
  %495 = vmatprep.subr.mxu0 %v236
  %496 = vmatpush1.msra.mxu0 %v235
  %497 = vmatprep.subr.mxu0 %v234
  %498 = vmatpush1.msra.mxu0 %v233
  %499 = vmatprep.subr.mxu0 %v232
  %500 = vmatpush1.msra.mxu0 %v231
  %501 = vmatprep.subr.mxu0 0.0
  %502 = vmatpush2.msra.mxu0 0.0
  %503 = vmatprep.subr.mxu0 0.0
  %504 = vmatpush2.msra.mxu0 0.0
  %505 = vmatprep.subr.mxu0 0.0
  %506 = vmatpush2.msra.mxu0 0.0
  %507 = vmatprep.subr.mxu0 0.0
  %508 = vmatpush2.msra.mxu0 0.0
  %509 = vmatprep.subr.mxu0 0.0
  %510 = vmatpush2.msra.mxu0 0.0
  %511 = vmatprep.subr.mxu0 0.0
  %512 = vmatpush2.msra.mxu0 0.0
  %513 = vmatprep.subr.mxu0 0.0
  %514 = vmatpush2.msra.mxu0 0.0
  %515 = vmatprep.subr.mxu0 0.0
  %516 = vmatpush2.msra.mxu0 0.0
  %517 = vmatprep.subr.mxu0 0.0
  %518 = vmatpush2.msra.mxu0 0.0
  %519 = vmatprep.subr.mxu0 0.0
  %520 = vmatpush2.msra.mxu0 0.0
  %521 = vmatprep.subr.mxu0 0.0
  %522 = vmatpush2.msra.mxu0 0.0
  %523 = vmatprep.subr.mxu0 0.0
  %524 = vmatpush2.msra.mxu0 0.0
  %525 = vmatprep.subr.mxu0 0.0
  %526 = vmatpush2.msra.mxu0 0.0
  %527 = vmatprep.subr.mxu0 0.0
  %528 = vmatpush2.msra.mxu0 0.0
  %529 = vmatprep.subr.mxu0 0.0
  %530 = vmatpush2.msra.mxu0 0.0
  %531 = vmatprep.subr.mxu0 0.0
  %532 = vmatpush2.msra.mxu0 0.0
  %533 = vmatprep.mubr.f32.mxu0 0.0
  %534 = vmatmul.mubr.f32.gmra.mxu0 %v467
  %v535 = vpop.f32.mrf.mxu0
  %v536 = vadd.f32 0.0, %v535
  %v537 = vpop.f32.mrf.mxu0
  %v538 = vadd.f32 0.0, %v537
  %539 = vdwg.mxu0
  %v540 = vadd.f32 %v465, %v536
  %v541 = vadd.f32 %v466, %v538
  %v542 = vxor.u32 %v540, 2147483648
  %v543 = vxor.u32 %v541, 2147483648
  %v544 = vmul.f32 %v542, 1.442695
  %v545 = vpow.pop %v544
  %v546 = vmul.f32 %v543, 1.442695
  %v547 = vpow.pop %v546
  %v548 = vadd.f32 %v545, 1.0
  %v549 = vadd.f32 %v547, 1.0
  %v550 = vrcp.pop %v548
  %v551 = vmul.f32 1.0, %v550
  %v552 = vrcp.pop %v549
  %v553 = vmul.f32 1.0, %v552
  %v554 = vtanh.pop %v541
  %v555 = vmul.f32 %v551, %v453
  %v556 = vmul.f32 %v551, %v554
  %558 = vrot.lane.b32.xlu0 %v556, 64
  %v559 = vpop.permute.xlu0 %558
  %v561 = vadd.f32 %v555, %v559
  %v562 = vtanh.pop %v561
  %v563 = vmul.f32 %v553, %v562
  %565 = vrot.lane.b32.xlu0 %v563, 64
  %v566 = vpop.permute.xlu0 %565
  %568 = vst.msk [vmem:[#allocation3 + $0x10] sm:$0xff] %vm351, %v566
  %569 = vrot.lane.b32.xlu0 %v563, 32
  %v570 = vpop.permute.xlu0 %569
  %572 = vst.msk [vmem:[#allocation4 + $0x28] sm:$0xff] %vm351, %v570
  %v573 = vld [vmem:[#allocation2 + $0x30] sm:$0xff]
  %v574 = vld [vmem:[#allocation2 + $0x38] sm:$0xff]
  %v575 = vsel %vm77, %v566, 0
  %577 = vmatprep.subr.mxu0 0.0
  %578 = vmatpush1.msra.mxu0 0.0
  %579 = vmatprep.subr.mxu0 0.0
  %580 = vmatpush1.msra.mxu0 0.0
  %581 = vmatprep.subr.mxu0 0.0
  %582 = vmatpush1.msra.mxu0 0.0
  %583 = vmatprep.subr.mxu0 0.0
  %584 = vmatpush1.msra.mxu0 0.0
  %585 = vmatprep.subr.mxu0 0.0
  %586 = vmatpush1.msra.mxu0 0.0
  %587 = vmatprep.subr.mxu0 0.0
  %588 = vmatpush1.msra.mxu0 0.0
  %589 = vmatprep.subr.mxu0 0.0
  %590 = vmatpush1.msra.mxu0 0.0
  %591 = vmatprep.subr.mxu0 0.0
  %592 = vmatpush1.msra.mxu0 0.0
  %593 = vmatprep.subr.mxu0 %v246
  %594 = vmatpush1.msra.mxu0 %v245
  %595 = vmatprep.subr.mxu0 %v244
  %596 = vmatpush1.msra.mxu0 %v243
  %597 = vmatprep.subr.mxu0 %v242
  %598 = vmatpush1.msra.mxu0 %v241
  %599 = vmatprep.subr.mxu0 %v240
  %600 = vmatpush1.msra.mxu0 %v239
  %601 = vmatprep.subr.mxu0 %v238
  %602 = vmatpush1.msra.mxu0 %v237
  %603 = vmatprep.subr.mxu0 %v236
  %604 = vmatpush1.msra.mxu0 %v235
  %605 = vmatprep.subr.mxu0 %v234
  %606 = vmatpush1.msra.mxu0 %v233
  %607 = vmatprep.subr.mxu0 %v232
  %608 = vmatpush1.msra.mxu0 %v231
  %609 = vmatprep.subr.mxu0 0.0
  %610 = vmatpush2.msra.mxu0 0.0
  %611 = vmatprep.subr.mxu0 0.0
  %612 = vmatpush2.msra.mxu0 0.0
  %613 = vmatprep.subr.mxu0 0.0
  %614 = vmatpush2.msra.mxu0 0.0
  %615 = vmatprep.subr.mxu0 0.0
  %616 = vmatpush2.msra.mxu0 0.0
  %617 = vmatprep.subr.mxu0 0.0
  %618 = vmatpush2.msra.mxu0 0.0
  %619 = vmatprep.subr.mxu0 0.0
  %620 = vmatpush2.msra.mxu0 0.0
  %621 = vmatprep.subr.mxu0 0.0
  %622 = vmatpush2.msra.mxu0 0.0
  %623 = vmatprep.subr.mxu0 0.0
  %624 = vmatpush2.msra.mxu0 0.0
  %625 = vmatprep.subr.mxu0 0.0
  %626 = vmatpush2.msra.mxu0 0.0
  %627 = vmatprep.subr.mxu0 0.0
  %628 = vmatpush2.msra.mxu0 0.0
  %629 = vmatprep.subr.mxu0 0.0
  %630 = vmatpush2.msra.mxu0 0.0
  %631 = vmatprep.subr.mxu0 0.0
  %632 = vmatpush2.msra.mxu0 0.0
  %633 = vmatprep.subr.mxu0 0.0
  %634 = vmatpush2.msra.mxu0 0.0
  %635 = vmatprep.subr.mxu0 0.0
  %636 = vmatpush2.msra.mxu0 0.0
  %637 = vmatprep.subr.mxu0 0.0
  %638 = vmatpush2.msra.mxu0 0.0
  %639 = vmatprep.subr.mxu0 0.0
  %640 = vmatpush2.msra.mxu0 0.0
  %641 = vmatprep.mubr.f32.mxu0 0.0
  %642 = vmatmul.mubr.f32.gmra.mxu0 %v575
  %v643 = vpop.f32.mrf.mxu0
  %v644 = vadd.f32 0.0, %v643
  %v645 = vpop.f32.mrf.mxu0
  %v646 = vadd.f32 0.0, %v645
  %647 = vdwg.mxu0
  %v648 = vadd.f32 %v573, %v644
  %v649 = vadd.f32 %v574, %v646
  %v650 = vxor.u32 %v648, 2147483648
  %v651 = vxor.u32 %v649, 2147483648
  %v652 = vmul.f32 %v650, 1.442695
  %v653 = vpow.pop %v652
  %v654 = vmul.f32 %v651, 1.442695
  %v655 = vpow.pop %v654
  %v656 = vadd.f32 %v653, 1.0
  %v657 = vadd.f32 %v655, 1.0
  %v658 = vrcp.pop %v656
  %v659 = vmul.f32 1.0, %v658
  %v660 = vrcp.pop %v657
  %v661 = vmul.f32 1.0, %v660
  %v662 = vtanh.pop %v649
  %v663 = vmul.f32 %v659, %v561
  %v664 = vmul.f32 %v659, %v662
  %666 = vrot.lane.b32.xlu0 %v664, 64
  %v667 = vpop.permute.xlu0 %666
  %v669 = vadd.f32 %v663, %v667
  %v670 = vtanh.pop %v669
  %v671 = vmul.f32 %v661, %v670
  %673 = vrot.lane.b32.xlu0 %v671, 64
  %v674 = vpop.permute.xlu0 %673
  %676 = vst.msk [vmem:[#allocation3 + $0x18] sm:$0xff] %vm351, %v674
  %677 = vrot.lane.b32.xlu0 %v671, 32
  %v678 = vpop.permute.xlu0 %677
  %680 = vst.msk [vmem:[#allocation4 + $0x20] sm:$0xff] %vm351, %v678
  %v681 = vld [vmem:[#allocation2 + $0x40] sm:$0xff]
  %v682 = vld [vmem:[#allocation2 + $0x48] sm:$0xff]
  %v683 = vsel %vm77, %v674, 0
  %685 = vmatprep.subr.mxu0 0.0
  %686 = vmatpush1.msra.mxu0 0.0
  %687 = vmatprep.subr.mxu0 0.0
  %688 = vmatpush1.msra.mxu0 0.0
  %689 = vmatprep.subr.mxu0 0.0
  %690 = vmatpush1.msra.mxu0 0.0
  %691 = vmatprep.subr.mxu0 0.0
  %692 = vmatpush1.msra.mxu0 0.0
  %693 = vmatprep.subr.mxu0 0.0
  %694 = vmatpush1.msra.mxu0 0.0
  %695 = vmatprep.subr.mxu0 0.0
  %696 = vmatpush1.msra.mxu0 0.0
  %697 = vmatprep.subr.mxu0 0.0
  %698 = vmatpush1.msra.mxu0 0.0
  %699 = vmatprep.subr.mxu0 0.0
  %700 = vmatpush1.msra.mxu0 0.0
  %701 = vmatprep.subr.mxu0 %v246
  %702 = vmatpush1.msra.mxu0 %v245
  %703 = vmatprep.subr.mxu0 %v244
  %704 = vmatpush1.msra.mxu0 %v243
  %705 = vmatprep.subr.mxu0 %v242
  %706 = vmatpush1.msra.mxu0 %v241
  %707 = vmatprep.subr.mxu0 %v240
  %708 = vmatpush1.msra.mxu0 %v239
  %709 = vmatprep.subr.mxu0 %v238
  %710 = vmatpush1.msra.mxu0 %v237
  %711 = vmatprep.subr.mxu0 %v236
  %712 = vmatpush1.msra.mxu0 %v235
  %713 = vmatprep.subr.mxu0 %v234
  %714 = vmatpush1.msra.mxu0 %v233
  %715 = vmatprep.subr.mxu0 %v232
  %716 = vmatpush1.msra.mxu0 %v231
  %717 = vmatprep.subr.mxu0 0.0
  %718 = vmatpush2.msra.mxu0 0.0
  %719 = vmatprep.subr.mxu0 0.0
  %720 = vmatpush2.msra.mxu0 0.0
  %721 = vmatprep.subr.mxu0 0.0
  %722 = vmatpush2.msra.mxu0 0.0
  %723 = vmatprep.subr.mxu0 0.0
  %724 = vmatpush2.msra.mxu0 0.0
  %725 = vmatprep.subr.mxu0 0.0
  %726 = vmatpush2.msra.mxu0 0.0
  %727 = vmatprep.subr.mxu0 0.0
  %728 = vmatpush2.msra.mxu0 0.0
  %729 = vmatprep.subr.mxu0 0.0
  %730 = vmatpush2.msra.mxu0 0.0
  %731 = vmatprep.subr.mxu0 0.0
  %732 = vmatpush2.msra.mxu0 0.0
  %733 = vmatprep.subr.mxu0 0.0
  %734 = vmatpush2.msra.mxu0 0.0
  %735 = vmatprep.subr.mxu0 0.0
  %736 = vmatpush2.msra.mxu0 0.0
  %737 = vmatprep.subr.mxu0 0.0
  %738 = vmatpush2.msra.mxu0 0.0
  %739 = vmatprep.subr.mxu0 0.0
  %740 = vmatpush2.msra.mxu0 0.0
  %741 = vmatprep.subr.mxu0 0.0
  %742 = vmatpush2.msra.mxu0 0.0
  %743 = vmatprep.subr.mxu0 0.0
  %744 = vmatpush2.msra.mxu0 0.0
  %745 = vmatprep.subr.mxu0 0.0
  %746 = vmatpush2.msra.mxu0 0.0
  %747 = vmatprep.subr.mxu0 0.0
  %748 = vmatpush2.msra.mxu0 0.0
  %749 = vmatprep.mubr.f32.mxu0 0.0
  %750 = vmatmul.mubr.f32.gmra.mxu0 %v683
  %v751 = vpop.f32.mrf.mxu0
  %v752 = vadd.f32 0.0, %v751
  %v753 = vpop.f32.mrf.mxu0
  %v754 = vadd.f32 0.0, %v753
  %755 = vdwg.mxu0
  %v756 = vadd.f32 %v681, %v752
  %v757 = vadd.f32 %v682, %v754
  %v758 = vxor.u32 %v756, 2147483648
  %v759 = vxor.u32 %v757, 2147483648
  %v760 = vmul.f32 %v758, 1.442695
  %v761 = vpow.pop %v760
  %v762 = vmul.f32 %v759, 1.442695
  %v763 = vpow.pop %v762
  %v764 = vadd.f32 %v761, 1.0
  %v765 = vadd.f32 %v763, 1.0
  %v766 = vrcp.pop %v764
  %v767 = vmul.f32 1.0, %v766
  %v768 = vrcp.pop %v765
  %v769 = vmul.f32 1.0, %v768
  %v770 = vtanh.pop %v757
  %v771 = vmul.f32 %v767, %v669
  %v772 = vmul.f32 %v767, %v770
  %774 = vrot.lane.b32.xlu0 %v772, 64
  %v775 = vpop.permute.xlu0 %774
  %v777 = vadd.f32 %v771, %v775
  %v778 = vtanh.pop %v777
  %v779 = vmul.f32 %v769, %v778
  %781 = vrot.lane.b32.xlu0 %v779, 64
  %v782 = vpop.permute.xlu0 %781
  %784 = vst.msk [vmem:[#allocation3 + $0x20] sm:$0xff] %vm351, %v782
  %785 = vrot.lane.b32.xlu0 %v779, 32
  %v786 = vpop.permute.xlu0 %785
  %788 = vst.msk [vmem:[#allocation4 + $0x18] sm:$0xff] %vm351, %v786
  %v789 = vld [vmem:[#allocation2 + $0x50] sm:$0xff]
  %v790 = vld [vmem:[#allocation2 + $0x58] sm:$0xff]
  %v791 = vsel %vm77, %v782, 0
  %793 = vmatprep.subr.mxu0 0.0
  %794 = vmatpush1.msra.mxu0 0.0
  %795 = vmatprep.subr.mxu0 0.0
  %796 = vmatpush1.msra.mxu0 0.0
  %797 = vmatprep.subr.mxu0 0.0
  %798 = vmatpush1.msra.mxu0 0.0
  %799 = vmatprep.subr.mxu0 0.0
  %800 = vmatpush1.msra.mxu0 0.0
  %801 = vmatprep.subr.mxu0 0.0
  %802 = vmatpush1.msra.mxu0 0.0
  %803 = vmatprep.subr.mxu0 0.0
  %804 = vmatpush1.msra.mxu0 0.0
  %805 = vmatprep.subr.mxu0 0.0
  %806 = vmatpush1.msra.mxu0 0.0
  %807 = vmatprep.subr.mxu0 0.0
  %808 = vmatpush1.msra.mxu0 0.0
  %809 = vmatprep.subr.mxu0 %v246
  %810 = vmatpush1.msra.mxu0 %v245
  %811 = vmatprep.subr.mxu0 %v244
  %812 = vmatpush1.msra.mxu0 %v243
  %813 = vmatprep.subr.mxu0 %v242
  %814 = vmatpush1.msra.mxu0 %v241
  %815 = vmatprep.subr.mxu0 %v240
  %816 = vmatpush1.msra.mxu0 %v239
  %817 = vmatprep.subr.mxu0 %v238
  %818 = vmatpush1.msra.mxu0 %v237
  %819 = vmatprep.subr.mxu0 %v236
  %820 = vmatpush1.msra.mxu0 %v235
  %821 = vmatprep.subr.mxu0 %v234
  %822 = vmatpush1.msra.mxu0 %v233
  %823 = vmatprep.subr.mxu0 %v232
  %824 = vmatpush1.msra.mxu0 %v231
  %825 = vmatprep.subr.mxu0 0.0
  %826 = vmatpush2.msra.mxu0 0.0
  %827 = vmatprep.subr.mxu0 0.0
  %828 = vmatpush2.msra.mxu0 0.0
  %829 = vmatprep.subr.mxu0 0.0
  %830 = vmatpush2.msra.mxu0 0.0
  %831 = vmatprep.subr.mxu0 0.0
  %832 = vmatpush2.msra.mxu0 0.0
  %833 = vmatprep.subr.mxu0 0.0
  %834 = vmatpush2.msra.mxu0 0.0
  %835 = vmatprep.subr.mxu0 0.0
  %836 = vmatpush2.msra.mxu0 0.0
  %837 = vmatprep.subr.mxu0 0.0
  %838 = vmatpush2.msra.mxu0 0.0
  %839 = vmatprep.subr.mxu0 0.0
  %840 = vmatpush2.msra.mxu0 0.0
  %841 = vmatprep.subr.mxu0 0.0
  %842 = vmatpush2.msra.mxu0 0.0
  %843 = vmatprep.subr.mxu0 0.0
  %844 = vmatpush2.msra.mxu0 0.0
  %845 = vmatprep.subr.mxu0 0.0
  %846 = vmatpush2.msra.mxu0 0.0
  %847 = vmatprep.subr.mxu0 0.0
  %848 = vmatpush2.msra.mxu0 0.0
  %849 = vmatprep.subr.mxu0 0.0
  %850 = vmatpush2.msra.mxu0 0.0
  %851 = vmatprep.subr.mxu0 0.0
  %852 = vmatpush2.msra.mxu0 0.0
  %853 = vmatprep.subr.mxu0 0.0
  %854 = vmatpush2.msra.mxu0 0.0
  %855 = vmatprep.subr.mxu0 0.0
  %856 = vmatpush2.msra.mxu0 0.0
  %857 = vmatprep.mubr.f32.mxu0 0.0
  %858 = vmatmul.mubr.f32.gmra.mxu0 %v791
  %v859 = vpop.f32.mrf.mxu0
  %v860 = vadd.f32 0.0, %v859
  %v861 = vpop.f32.mrf.mxu0
  %v862 = vadd.f32 0.0, %v861
  %863 = vdwg.mxu0
  %v864 = vadd.f32 %v789, %v860
  %v865 = vadd.f32 %v790, %v862
  %v866 = vxor.u32 %v864, 2147483648
  %v867 = vxor.u32 %v865, 2147483648
  %v868 = vmul.f32 %v866, 1.442695
  %v869 = vpow.pop %v868
  %v870 = vmul.f32 %v867, 1.442695
  %v871 = vpow.pop %v870
  %v872 = vadd.f32 %v869, 1.0
  %v873 = vadd.f32 %v871, 1.0
  %v874 = vrcp.pop %v872
  %v875 = vmul.f32 1.0, %v874
  %v876 = vrcp.pop %v873
  %v877 = vmul.f32 1.0, %v876
  %v878 = vtanh.pop %v865
  %v879 = vmul.f32 %v875, %v777
  %v880 = vmul.f32 %v875, %v878
  %882 = vrot.lane.b32.xlu0 %v880, 64
  %v883 = vpop.permute.xlu0 %882
  %v885 = vadd.f32 %v879, %v883
  %v886 = vtanh.pop %v885
  %v887 = vmul.f32 %v877, %v886
  %889 = vrot.lane.b32.xlu0 %v887, 64
  %v890 = vpop.permute.xlu0 %889
  %892 = vst.msk [vmem:[#allocation3 + $0x28] sm:$0xff] %vm351, %v890
  %893 = vrot.lane.b32.xlu0 %v887, 32
  %v894 = vpop.permute.xlu0 %893
  %896 = vst.msk [vmem:[#allocation4 + $0x10] sm:$0xff] %vm351, %v894
  %v897 = vld [vmem:[#allocation2 + $0x60] sm:$0xff]
  %v898 = vld [vmem:[#allocation2 + $0x68] sm:$0xff]
  %v899 = vsel %vm77, %v890, 0
  %901 = vmatprep.subr.mxu0 0.0
  %902 = vmatpush1.msra.mxu0 0.0
  %903 = vmatprep.subr.mxu0 0.0
  %904 = vmatpush1.msra.mxu0 0.0
  %905 = vmatprep.subr.mxu0 0.0
  %906 = vmatpush1.msra.mxu0 0.0
  %907 = vmatprep.subr.mxu0 0.0
  %908 = vmatpush1.msra.mxu0 0.0
  %909 = vmatprep.subr.mxu0 0.0
  %910 = vmatpush1.msra.mxu0 0.0
  %911 = vmatprep.subr.mxu0 0.0
  %912 = vmatpush1.msra.mxu0 0.0
  %913 = vmatprep.subr.mxu0 0.0
  %914 = vmatpush1.msra.mxu0 0.0
  %915 = vmatprep.subr.mxu0 0.0
  %916 = vmatpush1.msra.mxu0 0.0
  %917 = vmatprep.subr.mxu0 %v246
  %918 = vmatpush1.msra.mxu0 %v245
  %919 = vmatprep.subr.mxu0 %v244
  %920 = vmatpush1.msra.mxu0 %v243
  %921 = vmatprep.subr.mxu0 %v242
  %922 = vmatpush1.msra.mxu0 %v241
  %923 = vmatprep.subr.mxu0 %v240
  %924 = vmatpush1.msra.mxu0 %v239
  %925 = vmatprep.subr.mxu0 %v238
  %926 = vmatpush1.msra.mxu0 %v237
  %927 = vmatprep.subr.mxu0 %v236
  %928 = vmatpush1.msra.mxu0 %v235
  %929 = vmatprep.subr.mxu0 %v234
  %930 = vmatpush1.msra.mxu0 %v233
  %931 = vmatprep.subr.mxu0 %v232
  %932 = vmatpush1.msra.mxu0 %v231
  %933 = vmatprep.subr.mxu0 0.0
  %934 = vmatpush2.msra.mxu0 0.0
  %935 = vmatprep.subr.mxu0 0.0
  %936 = vmatpush2.msra.mxu0 0.0
  %937 = vmatprep.subr.mxu0 0.0
  %938 = vmatpush2.msra.mxu0 0.0
  %939 = vmatprep.subr.mxu0 0.0
  %940 = vmatpush2.msra.mxu0 0.0
  %941 = vmatprep.subr.mxu0 0.0
  %942 = vmatpush2.msra.mxu0 0.0
  %943 = vmatprep.subr.mxu0 0.0
  %944 = vmatpush2.msra.mxu0 0.0
  %945 = vmatprep.subr.mxu0 0.0
  %946 = vmatpush2.msra.mxu0 0.0
  %947 = vmatprep.subr.mxu0 0.0
  %948 = vmatpush2.msra.mxu0 0.0
  %949 = vmatprep.subr.mxu0 0.0
  %950 = vmatpush2.msra.mxu0 0.0
  %951 = vmatprep.subr.mxu0 0.0
  %952 = vmatpush2.msra.mxu0 0.0
  %953 = vmatprep.subr.mxu0 0.0
  %954 = vmatpush2.msra.mxu0 0.0
  %955 = vmatprep.subr.mxu0 0.0
  %956 = vmatpush2.msra.mxu0 0.0
  %957 = vmatprep.subr.mxu0 0.0
  %958 = vmatpush2.msra.mxu0 0.0
  %959 = vmatprep.subr.mxu0 0.0
  %960 = vmatpush2.msra.mxu0 0.0
  %961 = vmatprep.subr.mxu0 0.0
  %962 = vmatpush2.msra.mxu0 0.0
  %963 = vmatprep.subr.mxu0 0.0
  %964 = vmatpush2.msra.mxu0 0.0
  %965 = vmatprep.mubr.f32.mxu0 0.0
  %966 = vmatmul.mubr.f32.gmra.mxu0 %v899
  %v967 = vpop.f32.mrf.mxu0
  %v968 = vadd.f32 0.0, %v967
  %v969 = vpop.f32.mrf.mxu0
  %v970 = vadd.f32 0.0, %v969
  %971 = vdwg.mxu0
  %v972 = vadd.f32 %v897, %v968
  %v973 = vadd.f32 %v898, %v970
  %v974 = vxor.u32 %v972, 2147483648
  %v975 = vxor.u32 %v973, 2147483648
  %v976 = vmul.f32 %v974, 1.442695
  %v977 = vpow.pop %v976
  %v978 = vmul.f32 %v975, 1.442695
  %v979 = vpow.pop %v978
  %v980 = vadd.f32 %v977, 1.0
  %v981 = vadd.f32 %v979, 1.0
  %v982 = vrcp.pop %v980
  %v983 = vmul.f32 1.0, %v982
  %v984 = vrcp.pop %v981
  %v985 = vmul.f32 1.0, %v984
  %v986 = vtanh.pop %v973
  %v987 = vmul.f32 %v983, %v885
  %v988 = vmul.f32 %v983, %v986
  %990 = vrot.lane.b32.xlu0 %v988, 64
  %v991 = vpop.permute.xlu0 %990
  %v993 = vadd.f32 %v987, %v991
  %v994 = vtanh.pop %v993
  %v995 = vmul.f32 %v985, %v994
  %997 = vrot.lane.b32.xlu0 %v995, 64
  %v998 = vpop.permute.xlu0 %997
  %1000 = vst.msk [vmem:[#allocation3 + $0x30] sm:$0xff] %vm351, %v998
  %1001 = vrot.lane.b32.xlu0 %v995, 32
  %v1002 = vpop.permute.xlu0 %1001
  %1004 = vst.msk [vmem:[#allocation4 + $0x8] sm:$0xff] %vm351, %v1002
  %v1005 = vld [vmem:[#allocation2 + $0x70] sm:$0xff]
  %v1006 = vld [vmem:[#allocation2 + $0x78] sm:$0xff]
  %v1007 = vsel %vm77, %v998, 0
  %1009 = vmatprep.subr.mxu0 0.0
  %1010 = vmatpush1.msra.mxu0 0.0
  %1011 = vmatprep.subr.mxu0 0.0
  %1012 = vmatpush1.msra.mxu0 0.0
  %1013 = vmatprep.subr.mxu0 0.0
  %1014 = vmatpush1.msra.mxu0 0.0
  %1015 = vmatprep.subr.mxu0 0.0
  %1016 = vmatpush1.msra.mxu0 0.0
  %1017 = vmatprep.subr.mxu0 0.0
  %1018 = vmatpush1.msra.mxu0 0.0
  %1019 = vmatprep.subr.mxu0 0.0
  %1020 = vmatpush1.msra.mxu0 0.0
  %1021 = vmatprep.subr.mxu0 0.0
  %1022 = vmatpush1.msra.mxu0 0.0
  %1023 = vmatprep.subr.mxu0 0.0
  %1024 = vmatpush1.msra.mxu0 0.0
  %1025 = vmatprep.subr.mxu0 %v246
  %1026 = vmatpush1.msra.mxu0 %v245
  %1027 = vmatprep.subr.mxu0 %v244
  %1028 = vmatpush1.msra.mxu0 %v243
  %1029 = vmatprep.subr.mxu0 %v242
  %1030 = vmatpush1.msra.mxu0 %v241
  %1031 = vmatprep.subr.mxu0 %v240
  %1032 = vmatpush1.msra.mxu0 %v239
  %1033 = vmatprep.subr.mxu0 %v238
  %1034 = vmatpush1.msra.mxu0 %v237
  %1035 = vmatprep.subr.mxu0 %v236
  %1036 = vmatpush1.msra.mxu0 %v235
  %1037 = vmatprep.subr.mxu0 %v234
  %1038 = vmatpush1.msra.mxu0 %v233
  %1039 = vmatprep.subr.mxu0 %v232
  %1040 = vmatpush1.msra.mxu0 %v231
  %1041 = vmatprep.subr.mxu0 0.0
  %1042 = vmatpush2.msra.mxu0 0.0
  %1043 = vmatprep.subr.mxu0 0.0
  %1044 = vmatpush2.msra.mxu0 0.0
  %1045 = vmatprep.subr.mxu0 0.0
  %1046 = vmatpush2.msra.mxu0 0.0
  %1047 = vmatprep.subr.mxu0 0.0
  %1048 = vmatpush2.msra.mxu0 0.0
  %1049 = vmatprep.subr.mxu0 0.0
  %1050 = vmatpush2.msra.mxu0 0.0
  %1051 = vmatprep.subr.mxu0 0.0
  %1052 = vmatpush2.msra.mxu0 0.0
  %1053 = vmatprep.subr.mxu0 0.0
  %1054 = vmatpush2.msra.mxu0 0.0
  %1055 = vmatprep.subr.mxu0 0.0
  %1056 = vmatpush2.msra.mxu0 0.0
  %1057 = vmatprep.subr.mxu0 0.0
  %1058 = vmatpush2.msra.mxu0 0.0
  %1059 = vmatprep.subr.mxu0 0.0
  %1060 = vmatpush2.msra.mxu0 0.0
  %1061 = vmatprep.subr.mxu0 0.0
  %1062 = vmatpush2.msra.mxu0 0.0
  %1063 = vmatprep.subr.mxu0 0.0
  %1064 = vmatpush2.msra.mxu0 0.0
  %1065 = vmatprep.subr.mxu0 0.0
  %1066 = vmatpush2.msra.mxu0 0.0
  %1067 = vmatprep.subr.mxu0 0.0
  %1068 = vmatpush2.msra.mxu0 0.0
  %1069 = vmatprep.subr.mxu0 0.0
  %1070 = vmatpush2.msra.mxu0 0.0
  %1071 = vmatprep.subr.mxu0 0.0
  %1072 = vmatpush2.msra.mxu0 0.0
  %1073 = vmatprep.mubr.f32.mxu0 0.0
  %1074 = vmatmul.mubr.f32.gmra.mxu0 %v1007
  %v1075 = vpop.f32.mrf.mxu0
  %v1076 = vadd.f32 0.0, %v1075
  %v1077 = vpop.f32.mrf.mxu0
  %v1078 = vadd.f32 0.0, %v1077
  %1079 = vdwg.mxu0
  %v1080 = vadd.f32 %v1005, %v1076
  %v1081 = vadd.f32 %v1006, %v1078
  %v1082 = vxor.u32 %v1080, 2147483648
  %v1083 = vxor.u32 %v1081, 2147483648
  %v1084 = vmul.f32 %v1082, 1.442695
  %v1085 = vpow.pop %v1084
  %v1086 = vmul.f32 %v1083, 1.442695
  %v1087 = vpow.pop %v1086
  %v1088 = vadd.f32 %v1085, 1.0
  %v1089 = vadd.f32 %v1087, 1.0
  %v1090 = vrcp.pop %v1088
  %v1091 = vmul.f32 1.0, %v1090
  %v1092 = vrcp.pop %v1089
  %v1093 = vmul.f32 1.0, %v1092
  %v1094 = vtanh.pop %v1081
  %v1095 = vmul.f32 %v1091, %v993
  %v1096 = vmul.f32 %v1091, %v1094
  %1098 = vrot.lane.b32.xlu0 %v1096, 64
  %v1099 = vpop.permute.xlu0 %1098
  %v1101 = vadd.f32 %v1095, %v1099
  %v1102 = vtanh.pop %v1101
  %v1103 = vmul.f32 %v1093, %v1102
  %1105 = vrot.lane.b32.xlu0 %v1103, 64
  %v1106 = vpop.permute.xlu0 %1105
  %1108 = vst.msk [vmem:[#allocation3 + $0x38] sm:$0xff] %vm351, %v1106
  %1109 = vrot.lane.b32.xlu0 %v1103, 32
  %v1110 = vpop.permute.xlu0 %1109
  %1112 = vst.msk [vmem:[#allocation4] sm:$0xff] %vm351, %v1110
  %v1113 = vld [vmem:[#allocation3] sm:$0xff]
  %v1114 = vld [vmem:[#allocation3 + $0x8] sm:$0xff]
  %v1115 = vld [vmem:[#allocation3 + $0x10] sm:$0xff]
  %v1116 = vld [vmem:[#allocation3 + $0x18] sm:$0xff]
  %v1117 = vld [vmem:[#allocation3 + $0x20] sm:$0xff]
  %v1118 = vld [vmem:[#allocation3 + $0x28] sm:$0xff]
  %v1119 = vld [vmem:[#allocation3 + $0x30] sm:$0xff]
  %v1120 = vld [vmem:[#allocation3 + $0x38] sm:$0xff]
  %v1121 = vld [vmem:[%s4] sm:$0xff]
  %v1122 = vld [vmem:[%s4 + $0x8] sm:$0xff]
  %v1123 = vld [vmem:[%s4 + $0x10] sm:$0xff]
  %v1124 = vld [vmem:[%s4 + $0x18] sm:$0xff]
  %v1125 = vld [vmem:[#allocation4] sm:$0xff]
  %v1126 = vld [vmem:[#allocation4 + $0x8] sm:$0xff]
  %v1127 = vld [vmem:[#allocation4 + $0x10] sm:$0xff]
  %v1128 = vld [vmem:[#allocation4 + $0x18] sm:$0xff]
  %v1129 = vld [vmem:[#allocation4 + $0x20] sm:$0xff]
  %v1130 = vld [vmem:[#allocation4 + $0x28] sm:$0xff]
  %v1131 = vld [vmem:[#allocation4 + $0x30] sm:$0xff]
  %v1132 = vld [vmem:[#allocation4 + $0x38] sm:$0xff]
  %v1133 = vld [vmem:[%s5] sm:$0xff]
  %v1134 = vld [vmem:[%s5 + $0x8] sm:$0xff]
  %v1135 = vld [vmem:[%s5 + $0x10] sm:$0xff]
  %v1136 = vld [vmem:[%s5 + $0x18] sm:$0xff]
  %v1138 = vsel %vm351, %v1125, 0
  %v1141 = vsel %vm351, %v1126, 0
  %v1144 = vsel %vm351, %v1127, 0
  %v1147 = vsel %vm351, %v1128, 0
  %v1150 = vsel %vm351, %v1129, 0
  %v1153 = vsel %vm351, %v1130, 0
  %v1156 = vsel %vm351, %v1131, 0
  %v1159 = vsel %vm351, %v1132, 0
  %1161 = vmatprep.subr.mxu0 0.0
  %1162 = vmatpush1.msra.mxu0 0.0
  %1163 = vmatprep.subr.mxu0 0.0
  %1164 = vmatpush1.msra.mxu0 0.0
  %1165 = vmatprep.subr.mxu0 0.0
  %1166 = vmatpush1.msra.mxu0 0.0
  %1167 = vmatprep.subr.mxu0 0.0
  %1168 = vmatpush1.msra.mxu0 0.0
  %1169 = vmatprep.subr.mxu0 0.0
  %1170 = vmatpush1.msra.mxu0 0.0
  %1171 = vmatprep.subr.mxu0 0.0
  %1172 = vmatpush1.msra.mxu0 0.0
  %1173 = vmatprep.subr.mxu0 0.0
  %1174 = vmatpush1.msra.mxu0 0.0
  %1175 = vmatprep.subr.mxu0 0.0
  %1176 = vmatpush1.msra.mxu0 0.0
  %1177 = vmatprep.subr.mxu0 0.0
  %1178 = vmatpush1.msra.mxu0 0.0
  %1179 = vmatprep.subr.mxu0 0.0
  %1180 = vmatpush1.msra.mxu0 0.0
  %1181 = vmatprep.subr.mxu0 0.0
  %1182 = vmatpush1.msra.mxu0 0.0
  %1183 = vmatprep.subr.mxu0 0.0
  %1184 = vmatpush1.msra.mxu0 0.0
  %1185 = vmatprep.subr.mxu0 0.0
  %1186 = vmatpush1.msra.mxu0 %v1136
  %1187 = vmatprep.subr.mxu0 0.0
  %1188 = vmatpush1.msra.mxu0 %v1135
  %1189 = vmatprep.subr.mxu0 0.0
  %1190 = vmatpush1.msra.mxu0 %v1134
  %1191 = vmatprep.subr.mxu0 0.0
  %1192 = vmatpush1.msra.mxu0 %v1133
  %1193 = vmatprep.subr.mxu0 0.0
  %1194 = vmatpush2.msra.mxu0 0.0
  %1195 = vmatprep.subr.mxu0 0.0
  %1196 = vmatpush2.msra.mxu0 0.0
  %1197 = vmatprep.subr.mxu0 0.0
  %1198 = vmatpush2.msra.mxu0 0.0
  %1199 = vmatprep.subr.mxu0 0.0
  %1200 = vmatpush2.msra.mxu0 0.0
  %1201 = vmatprep.subr.mxu0 0.0
  %1202 = vmatpush2.msra.mxu0 0.0
  %1203 = vmatprep.subr.mxu0 0.0
  %1204 = vmatpush2.msra.mxu0 0.0
  %1205 = vmatprep.subr.mxu0 0.0
  %1206 = vmatpush2.msra.mxu0 0.0
  %1207 = vmatprep.subr.mxu0 0.0
  %1208 = vmatpush2.msra.mxu0 0.0
  %1209 = vmatprep.subr.mxu0 0.0
  %1210 = vmatpush2.msra.mxu0 0.0
  %1211 = vmatprep.subr.mxu0 0.0
  %1212 = vmatpush2.msra.mxu0 0.0
  %1213 = vmatprep.subr.mxu0 0.0
  %1214 = vmatpush2.msra.mxu0 0.0
  %1215 = vmatprep.subr.mxu0 0.0
  %1216 = vmatpush2.msra.mxu0 0.0
  %1217 = vmatprep.subr.mxu0 0.0
  %1218 = vmatpush2.msra.mxu0 0.0
  %1219 = vmatprep.subr.mxu0 0.0
  %1220 = vmatpush2.msra.mxu0 0.0
  %1221 = vmatprep.subr.mxu0 0.0
  %1222 = vmatpush2.msra.mxu0 0.0
  %1223 = vmatprep.subr.mxu0 0.0
  %1224 = vmatpush2.msra.mxu0 0.0
  %1225 = vmatprep.mubr.f32.mxu0 0.0
  %1226 = vmatmul.mubr.f32.gmra.mxu0 %v1138
  %v1227 = vpop.f32.mrf.mxu0
  %v1228 = vadd.f32 0.0, %v1227
  %v1229 = vpop.f32.mrf.mxu0
  %1230 = vmatprep.mubr.f32.mxu0 0.0
  %1231 = vmatmul.mubr.f32.gmra.mxu0 %v1141
  %v1232 = vpop.f32.mrf.mxu0
  %v1233 = vadd.f32 0.0, %v1232
  %v1234 = vpop.f32.mrf.mxu0
  %1235 = vmatprep.mubr.f32.mxu0 0.0
  %1236 = vmatmul.mubr.f32.gmra.mxu0 %v1144
  %v1237 = vpop.f32.mrf.mxu0
  %v1238 = vadd.f32 0.0, %v1237
  %v1239 = vpop.f32.mrf.mxu0
  %1240 = vmatprep.mubr.f32.mxu0 0.0
  %1241 = vmatmul.mubr.f32.gmra.mxu0 %v1147
  %v1242 = vpop.f32.mrf.mxu0
  %v1243 = vadd.f32 0.0, %v1242
  %v1244 = vpop.f32.mrf.mxu0
  %1245 = vmatprep.mubr.f32.mxu0 0.0
  %1246 = vmatmul.mubr.f32.gmra.mxu0 %v1150
  %v1247 = vpop.f32.mrf.mxu0
  %v1248 = vadd.f32 0.0, %v1247
  %v1249 = vpop.f32.mrf.mxu0
  %1250 = vmatprep.mubr.f32.mxu0 0.0
  %1251 = vmatmul.mubr.f32.gmra.mxu0 %v1153
  %v1252 = vpop.f32.mrf.mxu0
  %v1253 = vadd.f32 0.0, %v1252
  %v1254 = vpop.f32.mrf.mxu0
  %1255 = vmatprep.mubr.f32.mxu0 0.0
  %1256 = vmatmul.mubr.f32.gmra.mxu0 %v1156
  %v1257 = vpop.f32.mrf.mxu0
  %v1258 = vadd.f32 0.0, %v1257
  %v1259 = vpop.f32.mrf.mxu0
  %1260 = vmatprep.mubr.f32.mxu0 0.0
  %1261 = vmatmul.mubr.f32.gmra.mxu0 %v1159
  %v1262 = vpop.f32.mrf.mxu0
  %v1263 = vadd.f32 0.0, %v1262
  %v1264 = vpop.f32.mrf.mxu0
  %1265 = vdwg.mxu0
  %v1267 = vsel %vm351, %v1113, 0
  %v1270 = vsel %vm351, %v1114, 0
  %v1273 = vsel %vm351, %v1115, 0
  %v1276 = vsel %vm351, %v1116, 0
  %v1279 = vsel %vm351, %v1117, 0
  %v1282 = vsel %vm351, %v1118, 0
  %v1285 = vsel %vm351, %v1119, 0
  %v1288 = vsel %vm351, %v1120, 0
  %1290 = vmatprep.subr.mxu0 0.0
  %1291 = vmatpush1.msra.mxu0 0.0
  %1292 = vmatprep.subr.mxu0 0.0
  %1293 = vmatpush1.msra.mxu0 0.0
  %1294 = vmatprep.subr.mxu0 0.0
  %1295 = vmatpush1.msra.mxu0 0.0
  %1296 = vmatprep.subr.mxu0 0.0
  %1297 = vmatpush1.msra.mxu0 0.0
  %1298 = vmatprep.subr.mxu0 0.0
  %1299 = vmatpush1.msra.mxu0 0.0
  %1300 = vmatprep.subr.mxu0 0.0
  %1301 = vmatpush1.msra.mxu0 0.0
  %1302 = vmatprep.subr.mxu0 0.0
  %1303 = vmatpush1.msra.mxu0 0.0
  %1304 = vmatprep.subr.mxu0 0.0
  %1305 = vmatpush1.msra.mxu0 0.0
  %1306 = vmatprep.subr.mxu0 0.0
  %1307 = vmatpush1.msra.mxu0 0.0
  %1308 = vmatprep.subr.mxu0 0.0
  %1309 = vmatpush1.msra.mxu0 0.0
  %1310 = vmatprep.subr.mxu0 0.0
  %1311 = vmatpush1.msra.mxu0 0.0
  %1312 = vmatprep.subr.mxu0 0.0
  %1313 = vmatpush1.msra.mxu0 0.0
  %1314 = vmatprep.subr.mxu0 0.0
  %1315 = vmatpush1.msra.mxu0 %v1124
  %1316 = vmatprep.subr.mxu0 0.0
  %1317 = vmatpush1.msra.mxu0 %v1123
  %1318 = vmatprep.subr.mxu0 0.0
  %1319 = vmatpush1.msra.mxu0 %v1122
  %1320 = vmatprep.subr.mxu0 0.0
  %1321 = vmatpush1.msra.mxu0 %v1121
  %1322 = vmatprep.subr.mxu0 0.0
  %1323 = vmatpush2.msra.mxu0 0.0
  %1324 = vmatprep.subr.mxu0 0.0
  %1325 = vmatpush2.msra.mxu0 0.0
  %1326 = vmatprep.subr.mxu0 0.0
  %1327 = vmatpush2.msra.mxu0 0.0
  %1328 = vmatprep.subr.mxu0 0.0
  %1329 = vmatpush2.msra.mxu0 0.0
  %1330 = vmatprep.subr.mxu0 0.0
  %1331 = vmatpush2.msra.mxu0 0.0
  %1332 = vmatprep.subr.mxu0 0.0
  %1333 = vmatpush2.msra.mxu0 0.0
  %1334 = vmatprep.subr.mxu0 0.0
  %1335 = vmatpush2.msra.mxu0 0.0
  %1336 = vmatprep.subr.mxu0 0.0
  %1337 = vmatpush2.msra.mxu0 0.0
  %1338 = vmatprep.subr.mxu0 0.0
  %1339 = vmatpush2.msra.mxu0 0.0
  %1340 = vmatprep.subr.mxu0 0.0
  %1341 = vmatpush2.msra.mxu0 0.0
  %1342 = vmatprep.subr.mxu0 0.0
  %1343 = vmatpush2.msra.mxu0 0.0
  %1344 = vmatprep.subr.mxu0 0.0
  %1345 = vmatpush2.msra.mxu0 0.0
  %1346 = vmatprep.subr.mxu0 0.0
  %1347 = vmatpush2.msra.mxu0 0.0
  %1348 = vmatprep.subr.mxu0 0.0
  %1349 = vmatpush2.msra.mxu0 0.0
  %1350 = vmatprep.subr.mxu0 0.0
  %1351 = vmatpush2.msra.mxu0 0.0
  %1352 = vmatprep.subr.mxu0 0.0
  %1353 = vmatpush2.msra.mxu0 0.0
  %1354 = vmatprep.mubr.f32.mxu0 0.0
  %1355 = vmatmul.mubr.f32.gmra.mxu0 %v1267
  %v1356 = vpop.f32.mrf.mxu0
  %v1357 = vadd.f32 %v1228, %v1356
  %v1358 = vpop.f32.mrf.mxu0
  %1359 = vmatprep.mubr.f32.mxu0 0.0
  %1360 = vmatmul.mubr.f32.gmra.mxu0 %v1270
  %v1361 = vpop.f32.mrf.mxu0
  %v1362 = vadd.f32 %v1233, %v1361
  %v1363 = vpop.f32.mrf.mxu0
  %1364 = vmatprep.mubr.f32.mxu0 0.0
  %1365 = vmatmul.mubr.f32.gmra.mxu0 %v1273
  %v1366 = vpop.f32.mrf.mxu0
  %v1367 = vadd.f32 %v1238, %v1366
  %v1368 = vpop.f32.mrf.mxu0
  %1369 = vmatprep.mubr.f32.mxu0 0.0
  %1370 = vmatmul.mubr.f32.gmra.mxu0 %v1276
  %v1371 = vpop.f32.mrf.mxu0
  %v1372 = vadd.f32 %v1243, %v1371
  %v1373 = vpop.f32.mrf.mxu0
  %1374 = vmatprep.mubr.f32.mxu0 0.0
  %1375 = vmatmul.mubr.f32.gmra.mxu0 %v1279
  %v1376 = vpop.f32.mrf.mxu0
  %v1377 = vadd.f32 %v1248, %v1376
  %v1378 = vpop.f32.mrf.mxu0
  %1379 = vmatprep.mubr.f32.mxu0 0.0
  %1380 = vmatmul.mubr.f32.gmra.mxu0 %v1282
  %v1381 = vpop.f32.mrf.mxu0
  %v1382 = vadd.f32 %v1253, %v1381
  %v1383 = vpop.f32.mrf.mxu0
  %1384 = vmatprep.mubr.f32.mxu0 0.0
  %1385 = vmatmul.mubr.f32.gmra.mxu0 %v1285
  %v1386 = vpop.f32.mrf.mxu0
  %v1387 = vadd.f32 %v1258, %v1386
  %v1388 = vpop.f32.mrf.mxu0
  %1389 = vmatprep.mubr.f32.mxu0 0.0
  %1390 = vmatmul.mubr.f32.gmra.mxu0 %v1288
  %v1391 = vpop.f32.mrf.mxu0
  %v1392 = vadd.f32 %v1263, %v1391
  %v1393 = vpop.f32.mrf.mxu0
  %1394 = vdwg.mxu0
  %v1395 = vld [vmem:[%s6] sm:$0x1]
  %v1397 = vlaneseq
  %v1398 = vshrl.u32 %v1397, 7
  %v1399 = vsub.s32 0, %v1398
  %v1400 = vrot.slane %v1395, %v1399
  %v1402 = vadd.f32 %v1357, %v1400
  %v1403 = vadd.f32 %v1362, %v1400
  %v1404 = vadd.f32 %v1367, %v1400
  %v1405 = vadd.f32 %v1372, %v1400
  %v1406 = vadd.f32 %v1377, %v1400
  %v1407 = vadd.f32 %v1382, %v1400
  %v1408 = vadd.f32 %v1387, %v1400
  %v1409 = vadd.f32 %v1392, %v1400
  %v1410 = vmax.f32 %v1402, 0.0
  %v1411 = vmax.f32 %v1403, 0.0
  %v1412 = vmax.f32 %v1404, 0.0
  %v1413 = vmax.f32 %v1405, 0.0
  %v1414 = vmax.f32 %v1406, 0.0
  %v1415 = vmax.f32 %v1407, 0.0
  %v1416 = vmax.f32 %v1408, 0.0
  %v1417 = vmax.f32 %v1409, 0.0
  %v1418 = vmax.f32 %v1410, %v1411
  %v1419 = vmax.f32 %v1418, %v1412
  %v1420 = vmax.f32 %v1419, %v1413
  %v1421 = vmax.f32 %v1420, %v1414
  %v1422 = vmax.f32 %v1421, %v1415
  %v1423 = vmax.f32 %v1422, %v1416
  %v1424 = vmax.f32 %v1423, %v1417
  %v1425 = vld [vmem:[%s7] sm:$0xff]
  %v1426 = vld [vmem:[%s7 + $0x8] sm:$0xff]
  %v1427 = vld [vmem:[%s7 + $0x10] sm:$0xff]
  %v1428 = vld [vmem:[%s7 + $0x18] sm:$0xff]
  %v1429 = vld [vmem:[%s7 + $0x20] sm:$0xff]
  %v1430 = vld [vmem:[%s7 + $0x28] sm:$0xff]
  %v1431 = vld [vmem:[%s7 + $0x30] sm:$0xff]
  %v1432 = vld [vmem:[%s7 + $0x38] sm:$0xff]
  %v1433 = vld [vmem:[%s8] sm:$0xff]
  %v1434 = vld [vmem:[%s8 + $0x8] sm:$0xff]
  %vm1435 = vcmask 130048
  %v1437 = vsel %vm1435, %v1424, 0
  %1439 = vmatprep.subr.mxu0 0.0
  %1440 = vmatpush1.msra.mxu0 0.0
  %1441 = vmatprep.subr.mxu0 0.0
  %1442 = vmatpush1.msra.mxu0 0.0
  %1443 = vmatprep.subr.mxu0 0.0
  %1444 = vmatpush1.msra.mxu0 0.0
  %1445 = vmatprep.subr.mxu0 0.0
  %1446 = vmatpush1.msra.mxu0 0.0
  %1447 = vmatprep.subr.mxu0 0.0
  %1448 = vmatpush1.msra.mxu0 0.0
  %1449 = vmatprep.subr.mxu0 0.0
  %1450 = vmatpush1.msra.mxu0 0.0
  %1451 = vmatprep.subr.mxu0 0.0
  %1452 = vmatpush1.msra.mxu0 0.0
  %1453 = vmatprep.subr.mxu0 0.0
  %1454 = vmatpush1.msra.mxu0 0.0
  %1455 = vmatprep.subr.mxu0 0.0
  %1456 = vmatpush1.msra.mxu0 0.0
  %1457 = vmatprep.subr.mxu0 0.0
  %1458 = vmatpush1.msra.mxu0 0.0
  %1459 = vmatprep.subr.mxu0 0.0
  %1460 = vmatpush1.msra.mxu0 0.0
  %1461 = vmatprep.subr.mxu0 0.0
  %1462 = vmatpush1.msra.mxu0 0.0
  %1463 = vmatprep.subr.mxu0 0.0
  %1464 = vmatpush1.msra.mxu0 0.0
  %1465 = vmatprep.subr.mxu0 0.0
  %1466 = vmatpush1.msra.mxu0 0.0
  %1467 = vmatprep.subr.mxu0 0.0
  %1468 = vmatpush1.msra.mxu0 %v1434
  %1469 = vmatprep.subr.mxu0 0.0
  %1470 = vmatpush1.msra.mxu0 %v1433
  %1471 = vmatprep.subr.mxu0 0.0
  %1472 = vmatpush2.msra.mxu0 0.0
  %1473 = vmatprep.subr.mxu0 0.0
  %1474 = vmatpush2.msra.mxu0 0.0
  %1475 = vmatprep.subr.mxu0 0.0
  %1476 = vmatpush2.msra.mxu0 0.0
  %1477 = vmatprep.subr.mxu0 0.0
  %1478 = vmatpush2.msra.mxu0 0.0
  %1479 = vmatprep.subr.mxu0 0.0
  %1480 = vmatpush2.msra.mxu0 0.0
  %1481 = vmatprep.subr.mxu0 0.0
  %1482 = vmatpush2.msra.mxu0 0.0
  %1483 = vmatprep.subr.mxu0 0.0
  %1484 = vmatpush2.msra.mxu0 0.0
  %1485 = vmatprep.subr.mxu0 0.0
  %1486 = vmatpush2.msra.mxu0 0.0
  %1487 = vmatprep.subr.mxu0 0.0
  %1488 = vmatpush2.msra.mxu0 0.0
  %1489 = vmatprep.subr.mxu0 0.0
  %1490 = vmatpush2.msra.mxu0 0.0
  %1491 = vmatprep.subr.mxu0 0.0
  %1492 = vmatpush2.msra.mxu0 0.0
  %1493 = vmatprep.subr.mxu0 0.0
  %1494 = vmatpush2.msra.mxu0 0.0
  %1495 = vmatprep.subr.mxu0 0.0
  %1496 = vmatpush2.msra.mxu0 0.0
  %1497 = vmatprep.subr.mxu0 0.0
  %1498 = vmatpush2.msra.mxu0 0.0
  %1499 = vmatprep.subr.mxu0 0.0
  %1500 = vmatpush2.msra.mxu0 0.0
  %1501 = vmatprep.subr.mxu0 0.0
  %1502 = vmatpush2.msra.mxu0 0.0
  %1503 = vmatprep.mubr.f32.mxu0 0.0
  %1504 = vmatmul.mubr.f32.gmra.mxu0 %v1437
  %v1505 = vpop.f32.mrf.mxu0
  %v1506 = vadd.f32 0.0, %v1505
  %v1507 = vpop.f32.mrf.mxu0
  %1508 = vdwg.mxu0
  %v1509 = vsel %vm77, %v1106, 0
  %1511 = vmatprep.subr.mxu0 0.0
  %1512 = vmatpush1.msra.mxu0 0.0
  %1513 = vmatprep.subr.mxu0 0.0
  %1514 = vmatpush1.msra.mxu0 0.0
  %1515 = vmatprep.subr.mxu0 0.0
  %1516 = vmatpush1.msra.mxu0 0.0
  %1517 = vmatprep.subr.mxu0 0.0
  %1518 = vmatpush1.msra.mxu0 0.0
  %1519 = vmatprep.subr.mxu0 0.0
  %1520 = vmatpush1.msra.mxu0 0.0
  %1521 = vmatprep.subr.mxu0 0.0
  %1522 = vmatpush1.msra.mxu0 0.0
  %1523 = vmatprep.subr.mxu0 0.0
  %1524 = vmatpush1.msra.mxu0 0.0
  %1525 = vmatprep.subr.mxu0 0.0
  %1526 = vmatpush1.msra.mxu0 0.0
  %1527 = vmatprep.subr.mxu0 0.0
  %1528 = vmatpush1.msra.mxu0 %v1432
  %1529 = vmatprep.subr.mxu0 0.0
  %1530 = vmatpush1.msra.mxu0 %v1431
  %1531 = vmatprep.subr.mxu0 0.0
  %1532 = vmatpush1.msra.mxu0 %v1430
  %1533 = vmatprep.subr.mxu0 0.0
  %1534 = vmatpush1.msra.mxu0 %v1429
  %1535 = vmatprep.subr.mxu0 0.0
  %1536 = vmatpush1.msra.mxu0 %v1428
  %1537 = vmatprep.subr.mxu0 0.0
  %1538 = vmatpush1.msra.mxu0 %v1427
  %1539 = vmatprep.subr.mxu0 0.0
  %1540 = vmatpush1.msra.mxu0 %v1426
  %1541 = vmatprep.subr.mxu0 0.0
  %1542 = vmatpush1.msra.mxu0 %v1425
  %1543 = vmatprep.subr.mxu0 0.0
  %1544 = vmatpush2.msra.mxu0 0.0
  %1545 = vmatprep.subr.mxu0 0.0
  %1546 = vmatpush2.msra.mxu0 0.0
  %1547 = vmatprep.subr.mxu0 0.0
  %1548 = vmatpush2.msra.mxu0 0.0
  %1549 = vmatprep.subr.mxu0 0.0
  %1550 = vmatpush2.msra.mxu0 0.0
  %1551 = vmatprep.subr.mxu0 0.0
  %1552 = vmatpush2.msra.mxu0 0.0
  %1553 = vmatprep.subr.mxu0 0.0
  %1554 = vmatpush2.msra.mxu0 0.0
  %1555 = vmatprep.subr.mxu0 0.0
  %1556 = vmatpush2.msra.mxu0 0.0
  %1557 = vmatprep.subr.mxu0 0.0
  %1558 = vmatpush2.msra.mxu0 0.0
  %1559 = vmatprep.subr.mxu0 0.0
  %1560 = vmatpush2.msra.mxu0 0.0
  %1561 = vmatprep.subr.mxu0 0.0
  %1562 = vmatpush2.msra.mxu0 0.0
  %1563 = vmatprep.subr.mxu0 0.0
  %1564 = vmatpush2.msra.mxu0 0.0
  %1565 = vmatprep.subr.mxu0 0.0
  %1566 = vmatpush2.msra.mxu0 0.0
  %1567 = vmatprep.subr.mxu0 0.0
  %1568 = vmatpush2.msra.mxu0 0.0
  %1569 = vmatprep.subr.mxu0 0.0
  %1570 = vmatpush2.msra.mxu0 0.0
  %1571 = vmatprep.subr.mxu0 0.0
  %1572 = vmatpush2.msra.mxu0 0.0
  %1573 = vmatprep.subr.mxu0 0.0
  %1574 = vmatpush2.msra.mxu0 0.0
  %1575 = vmatprep.mubr.f32.mxu0 0.0
  %1576 = vmatmul.mubr.f32.gmra.mxu0 %v1509
  %v1577 = vpop.f32.mrf.mxu0
  %v1578 = vadd.f32 %v1506, %v1577
  %v1579 = vpop.f32.mrf.mxu0
  %1580 = vdwg.mxu0
  %v1581 = vld [vmem:[%s9] sm:$0x1]
  %v1583 = vlaneseq
  %v1584 = vshrl.u32 %v1583, 7
  %v1585 = vsub.s32 0, %v1584
  %v1586 = vrot.slane %v1581, %v1585
  %v1588 = vadd.f32 %v1578, %v1586
  %v1589 = vmax.f32 %v1588, 0.0
  %v1590 = vld [vmem:[%s10] sm:$0xff]
  %v1591 = vld [vmem:[%s10 + $0x8] sm:$0xff]
  %v1592 = vld [vmem:[%s10 + $0x10] sm:$0xff]
  %v1593 = vld [vmem:[%s10 + $0x18] sm:$0xff]
  %v1594 = vld [vmem:[%s10 + $0x20] sm:$0xff]
  %v1595 = vld [vmem:[%s10 + $0x28] sm:$0xff]
  %v1596 = vld [vmem:[%s10 + $0x30] sm:$0xff]
  %v1597 = vld [vmem:[%s10 + $0x38] sm:$0xff]
  %v1598 = vld [vmem:[%s11] sm:$0x1]
  %v1600 = vlaneseq
  %v1601 = vshrl.u32 %v1600, 7
  %v1602 = vsub.s32 0, %v1601
  %v1603 = vrot.slane %v1598, %v1602
  %v1606 = vsel %vm77, %v1589, 0
  %1608 = vmatprep.subr.mxu0 0.0
  %1609 = vmatpush1.msra.mxu0 0.0
  %1610 = vmatprep.subr.mxu0 0.0
  %1611 = vmatpush1.msra.mxu0 0.0
  %1612 = vmatprep.subr.mxu0 0.0
  %1613 = vmatpush1.msra.mxu0 0.0
  %1614 = vmatprep.subr.mxu0 0.0
  %1615 = vmatpush1.msra.mxu0 0.0
  %1616 = vmatprep.subr.mxu0 0.0
  %1617 = vmatpush1.msra.mxu0 0.0
  %1618 = vmatprep.subr.mxu0 0.0
  %1619 = vmatpush1.msra.mxu0 0.0
  %1620 = vmatprep.subr.mxu0 0.0
  %1621 = vmatpush1.msra.mxu0 0.0
  %1622 = vmatprep.subr.mxu0 0.0
  %1623 = vmatpush1.msra.mxu0 0.0
  %1624 = vmatprep.subr.mxu0 0.0
  %1625 = vmatpush1.msra.mxu0 %v1597
  %1626 = vmatprep.subr.mxu0 0.0
  %1627 = vmatpush1.msra.mxu0 %v1596
  %1628 = vmatprep.subr.mxu0 0.0
  %1629 = vmatpush1.msra.mxu0 %v1595
  %1630 = vmatprep.subr.mxu0 0.0
  %1631 = vmatpush1.msra.mxu0 %v1594
  %1632 = vmatprep.subr.mxu0 0.0
  %1633 = vmatpush1.msra.mxu0 %v1593
  %1634 = vmatprep.subr.mxu0 0.0
  %1635 = vmatpush1.msra.mxu0 %v1592
  %1636 = vmatprep.subr.mxu0 0.0
  %1637 = vmatpush1.msra.mxu0 %v1591
  %1638 = vmatprep.subr.mxu0 0.0
  %1639 = vmatpush1.msra.mxu0 %v1590
  %1640 = vmatprep.subr.mxu0 0.0
  %1641 = vmatpush2.msra.mxu0 0.0
  %1642 = vmatprep.subr.mxu0 0.0
  %1643 = vmatpush2.msra.mxu0 0.0
  %1644 = vmatprep.subr.mxu0 0.0
  %1645 = vmatpush2.msra.mxu0 0.0
  %1646 = vmatprep.subr.mxu0 0.0
  %1647 = vmatpush2.msra.mxu0 0.0
  %1648 = vmatprep.subr.mxu0 0.0
  %1649 = vmatpush2.msra.mxu0 0.0
  %1650 = vmatprep.subr.mxu0 0.0
  %1651 = vmatpush2.msra.mxu0 0.0
  %1652 = vmatprep.subr.mxu0 0.0
  %1653 = vmatpush2.msra.mxu0 0.0
  %1654 = vmatprep.subr.mxu0 0.0
  %1655 = vmatpush2.msra.mxu0 0.0
  %1656 = vmatprep.subr.mxu0 0.0
  %1657 = vmatpush2.msra.mxu0 0.0
  %1658 = vmatprep.subr.mxu0 0.0
  %1659 = vmatpush2.msra.mxu0 0.0
  %1660 = vmatprep.subr.mxu0 0.0
  %1661 = vmatpush2.msra.mxu0 0.0
  %1662 = vmatprep.subr.mxu0 0.0
  %1663 = vmatpush2.msra.mxu0 0.0
  %1664 = vmatprep.subr.mxu0 0.0
  %1665 = vmatpush2.msra.mxu0 0.0
  %1666 = vmatprep.subr.mxu0 0.0
  %1667 = vmatpush2.msra.mxu0 0.0
  %1668 = vmatprep.subr.mxu0 0.0
  %1669 = vmatpush2.msra.mxu0 0.0
  %1670 = vmatprep.subr.mxu0 0.0
  %1671 = vmatpush2.msra.mxu0 0.0
  %1672 = vmatprep.mubr.f32.mxu0 0.0
  %1673 = vmatmul.mubr.f32.gmra.mxu0 %v1606
  %v1674 = vpop.f32.mrf.mxu0
  %v1675 = vadd.f32 %v1603, %v1674
  %v1676 = vpop.f32.mrf.mxu0
  %1677 = vdwg.mxu0
  %vm1678 = vcmask 31744
  %1679 = vst.msk [vmem:[%s12] sm:$0xff] %vm1678, %v1675
  // Predicated region
  $region50: #{conv_rnn_forward_pallas.1} parent=0 // pred_check
    _
  $region51: #{conv_rnn_forward_pallas.1} parent=0 // pred_check_branch
    %1681 = sbr.rel (0) target = $region53
  $region52: #{conv_rnn_forward_pallas.1} parent=0 // pred_region
    _
  $region53: #{conv_rnn_forward_pallas.1} parent=0 // pred_fallthru
    _
  // Predicated region
  $region54: #{conv_rnn_forward_pallas.1} parent=0 // pred_check
    _
  $region55: #{conv_rnn_forward_pallas.1} parent=0 // pred_check_branch
    %1683 = sbr.rel (0) target = $region57
  $region56: #{conv_rnn_forward_pallas.1} parent=0 // pred_region
    _
  $region57: #{conv_rnn_forward_pallas.1} parent=0 // pred_fallthru
    _

</llo_original>
